<compile_context>
chip_gen: v5e
topology: v5e:2x2
jax: 0.10.0
libtpu: 0.0.40
codegen_flags: <defaults>
</compile_context>

<pallas_src>
import jax
import jax.numpy as jnp
from jax import lax
from jax.experimental import pallas as pl
from jax.experimental.pallas import tpu as pltpu

BN_EPS = 1e-5
LANE = 128


def _round_up(x, n):
    return ((x + n - 1) // n) * n


# ----------------------------------------------------------------------------
# In-kernel building blocks (operate on values; refs are read once at call site)
# ----------------------------------------------------------------------------

def _mlp(x, w1, b1, g, beta, w2, b2, views):
    """Linear -> BatchNorm1d (train-mode, PER-VIEW batch stats) -> ReLU -> Linear.

    `x` has views*B rows (view-major).  MXU operands are bf16 with f32
    accumulation; BN / ReLU math stays in f32.
    """
    h = jnp.dot(x.astype(jnp.bfloat16), w1,
                preferred_element_type=jnp.float32) + b1            # [V*B, H] f32
    rows = h.shape[0] // views
    chunks = []
    for v in range(views):                                          # per-view BN stats
        hv = h[v * rows:(v + 1) * rows]
        mu = jnp.mean(hv, axis=0, keepdims=True)
        d = hv - mu
        var = jnp.mean(d * d, axis=0, keepdims=True)                # centered two-pass
        chunks.append(d * lax.rsqrt(var + BN_EPS))
    hn = (chunks[0] if views == 1 else jnp.concatenate(chunks, axis=0)) * g + beta
    hr = jnp.maximum(hn, 0.0)
    return jnp.dot(hr.astype(jnp.bfloat16), w2,
                   preferred_element_type=jnp.float32) + b2


def _blend(c, mom_ref, onl_ref, to_bf16=False):
    """In-kernel EMA: c * momentum + (1 - c) * online, f32 math."""
    out = (c * mom_ref[...].astype(jnp.float32)
           + (1.0 - c) * onl_ref[...].astype(jnp.float32))
    return out.astype(jnp.bfloat16) if to_bf16 else out


# ----------------------------------------------------------------------------
# The fused BYOL kernel: one grid step, both views, both branches
# ----------------------------------------------------------------------------

def _byol_kernel(coef_ref,                                  # SMEM [2]: m, m^2
                 x_ref,                                     # [2B, HW, C] bf16
                 wb, bb,                                    # online backbone (pool folded)
                 pw1, pb1, pg, pbt, pw2, pb2,               # online projection head
                 qw1, qb1, qg, qbt, qw2, qb2,               # online prediction head
                 mwb, mbb,                                  # momentum backbone (pre-EMA)
                 mw1, mb1, mg, mbt, mw2, mb2,               # momentum projection head
                 p_ref, z_ref):                             # outputs [2B, OUT_PAD] f32
    two_b = x_ref.shape[0]
    b = two_b // 2

    # Global average pool: 1/(H*W) already folded into the backbone weight;
    # channels sit on lanes -> sublane-wise reduce, pooled is MXU-ready.
    pooled = jnp.sum(x_ref[...].astype(jnp.float32), axis=1)        # [2B, C] f32

    # ---- online branch: both views share weights -> one 2B-row matmul chain ----
    f = jnp.dot(pooled.astype(jnp.bfloat16), wb[...],
                preferred_element_type=jnp.float32) + bb[...]       # [2B, F]
    z = _mlp(f, pw1[...], pb1[...], pg[...], pbt[...], pw2[...], pb2[...], views=2)
    p_ref[...] = _mlp(z, qw1[...], qb1[...], qg[...], qbt[...], qw2[...], qb2[...],
                      views=2)                                      # [2B, OUT_PAD]

    # ---- momentum branch: EMA folded into the kernel --------------------------
    # slot 0: x1 (rows B:2B) through EMA-1 weights (coef m)
    # slot 1: x0 (rows 0:B)  through EMA-2 weights (coef m^2)
    for slot, rows in ((0, pooled[b:]), (1, pooled[:b])):
        c = coef_ref[slot]
        fm = jnp.dot(rows.astype(jnp.bfloat16), _blend(c, mwb, wb, True),
                     preferred_element_type=jnp.float32) + _blend(c, mbb, bb)
        zm = _mlp(fm,
                  _blend(c, mw1, pw1, True), _blend(c, mb1, pb1),
                  _blend(c, mg, pg), _blend(c, mbt, pbt),
                  _blend(c, mw2, pw2, True), _blend(c, mb2, pb2),
                  views=1)
        z_ref[slot * b:(slot + 1) * b, :] = zm


# ----------------------------------------------------------------------------
# Parameter prep
# ----------------------------------------------------------------------------

def _full_spec(a):
    nd = a.ndim
    return pl.BlockSpec(a.shape, lambda i: (0,) * nd)


def _prep_backbone(bk, inv_hw):
    w = (bk["w"] * inv_hw).astype(jnp.bfloat16)        # fold 1/(H*W) pool scale
    b = bk["b"].reshape(1, -1).astype(jnp.float32)
    return (w, b)


def _prep_head(head, pad_in=None, pad_out=None):
    w1 = head["w1"]
    if pad_in is not None:                             # zero-pad input rows
        w1 = jnp.pad(w1, ((0, pad_in - w1.shape[0]), (0, 0)))
    w2 = head["w2"]
    b2 = head["b2"].reshape(1, -1)
    if pad_out is not None:                            # lane-dense output columns
        w2 = jnp.pad(w2, ((0, 0), (0, pad_out - w2.shape[1])))
        b2 = jnp.pad(b2, ((0, 0), (0, pad_out - b2.shape[1])))
    return (w1.astype(jnp.bfloat16),
            head["b1"].reshape(1, -1).astype(jnp.float32),
            head["gamma"].reshape(1, -1).astype(jnp.float32),
            head["beta"].reshape(1, -1).astype(jnp.float32),
            w2.astype(jnp.bfloat16),
            b2.astype(jnp.float32))


def _linear_init(key, fan_in, fan_out):
    kw, kb = jax.random.split(key)
    lim = 1.0 / jnp.sqrt(jnp.float32(fan_in))
    w = jax.random.uniform(kw, (fan_in, fan_out), jnp.float32, -lim, lim)
    b = jax.random.uniform(kb, (fan_out,), jnp.float32, -lim, lim)
    return w, b


def _mlp_init(key, num_ftrs, hidden_dim, out_dim):
    k1, k2 = jax.random.split(key)
    w1, b1 = _linear_init(k1, num_ftrs, hidden_dim)
    w2, b2 = _linear_init(k2, hidden_dim, out_dim)
    return {
        "w1": w1, "b1": b1,
        "gamma": jnp.ones((hidden_dim,), jnp.float32),   # BN weight init = 1
        "beta": jnp.zeros((hidden_dim,), jnp.float32),   # BN bias   init = 0
        "w2": w2, "b2": b2,
    }


def init_byol_params(key, channels, num_ftrs, hidden_dim, out_dim):
    kb, kp, kq = jax.random.split(key, 3)
    wb, bb = _linear_init(kb, channels, num_ftrs)
    backbone = {"w": wb, "b": bb}
    proj = _mlp_init(kp, num_ftrs, hidden_dim, out_dim)
    pred = _mlp_init(kq, out_dim, hidden_dim, out_dim)
    return {
        "backbone": backbone,
        "projection_head": proj,
        "prediction_head": pred,
        # _init_momentum_encoder: deep copy of backbone + projection head
        "momentum_backbone": jax.tree.map(lambda a: a, backbone),
        "momentum_projection_head": jax.tree.map(lambda a: a, proj),
    }


# ----------------------------------------------------------------------------
# BYOL forward (symmetrized, matching the PyTorch module)
# ----------------------------------------------------------------------------

def _byol_forward_impl(params, x0, x1, m):
    B, C, H, W = x0.shape
    HW = H * W
    inv_hw = 1.0 / HW
    out_dim = params["prediction_head"]["w2"].shape[1]
    out_pad = _round_up(out_dim, LANE)

    # Single bf16 activation stack, channels on lanes, reused by BOTH branches.
    xs = (jnp.concatenate([x0, x1], axis=0)
          .astype(jnp.bfloat16)
          .reshape(2 * B, C, HW)
          .transpose(0, 2, 1))                                 # [2B, HW, C]

    # Momentum coefficients: EMA-1 uses m, EMA-2 (EMA applied twice per the
    # reference forward) == m^2 * mom + (1 - m^2) * online -> blend in-kernel.
    coefs = jnp.stack([m, m * m]).astype(jnp.float32)

    online_ops = (_prep_backbone(params["backbone"], inv_hw)
                  + _prep_head(params["projection_head"], pad_out=out_pad)
                  + _prep_head(params["prediction_head"], pad_in=out_pad, pad_out=out_pad))
    mom_ops = (_prep_backbone(params["momentum_backbone"], inv_hw)
               + _prep_head(params["momentum_projection_head"], pad_out=out_pad))
    operands = (xs,) + online_ops + mom_ops

    out_spec = pl.BlockSpec((2 * B, out_pad), lambda i: (0, 0))
    p_out, z_out = pl.pallas_call(
        _byol_kernel,
        out_shape=(jax.ShapeDtypeStruct((2 * B, out_pad), jnp.float32),
                   jax.ShapeDtypeStruct((2 * B, out_pad), jnp.float32)),
        grid=(1,),
        in_specs=[pl.BlockSpec(memory_space=pltpu.MemorySpace.SMEM)]
                 + [_full_spec(a) for a in operands],
        out_specs=(out_spec, out_spec),
        compiler_params=pltpu.CompilerParams(dimension_semantics=("arbitrary",)),
    )(coefs, *operands)

    p0 = p_out[:B, :out_dim]          # online(x0)
    p1 = p_out[B:, :out_dim]          # online(x1)
    z1 = z_out[:B, :out_dim]          # momentum EMA-1 (x1)
    z0 = z_out[B:, :out_dim]          # momentum EMA-2 (x0)

    # Matches BYOL.forward: ((z0, p0), (z1, p1))
    return ((z0, p0), (z1, p1))


byol_forward = jax.jit(_byol_forward_impl)


# ----------------------------------------------------------------------------
# Demo
# ----------------------------------------------------------------------------

if __name__ == "__main__":
    # Small shapes: batch=8, channels=4, spatial 8x8, num_ftrs=32,
    # hidden_dim=64, out_dim=16.
    B, C, H, W = 8, 4, 8, 8
    NUM_FTRS, HIDDEN, OUT = 32, 64, 16

    key = jax.random.PRNGKey(0)
    kx0, kx1, kp = jax.random.split(key, 3)
    x0 = jax.random.normal(kx0, (B, C, H, W), jnp.float32)
    x1 = jax.random.normal(kx1, (B, C, H, W), jnp.float32)

    params = init_byol_params(kp, C, NUM_FTRS, HIDDEN, OUT)

    (z0, p0), (z1, p1) = byol_forward(params, x0, x1, 0.999)
    jax.block_until_ready((z0, p0, z1, p1))

    assert z0.shape == (B, OUT) and p0.shape == (B, OUT)
    assert z1.shape == (B, OUT) and p1.shape == (B, OUT)
    assert bool(jnp.all(jnp.isfinite(z0))) and bool(jnp.all(jnp.isfinite(p0)))
    assert bool(jnp.all(jnp.isfinite(z1))) and bool(jnp.all(jnp.isfinite(p1)))
    print("KERNEL_OK")
</pallas_src>

<mosaic_0001>
module attributes {stable_mosaic.version = 11 : i64} {
  func.func @_byol_kernel(%arg0: i32, %arg1: memref<2xf32, #tpu.memory_space<smem>>, %arg2: memref<16x64x4xbf16, #tpu.memory_space<vmem>>, %arg3: memref<4x32xbf16, #tpu.memory_space<vmem>>, %arg4: memref<1x32xf32, #tpu.memory_space<vmem>>, %arg5: memref<32x64xbf16, #tpu.memory_space<vmem>>, %arg6: memref<1x64xf32, #tpu.memory_space<vmem>>, %arg7: memref<1x64xf32, #tpu.memory_space<vmem>>, %arg8: memref<1x64xf32, #tpu.memory_space<vmem>>, %arg9: memref<64x128xbf16, #tpu.memory_space<vmem>>, %arg10: memref<1x128xf32, #tpu.memory_space<vmem>>, %arg11: memref<128x64xbf16, #tpu.memory_space<vmem>>, %arg12: memref<1x64xf32, #tpu.memory_space<vmem>>, %arg13: memref<1x64xf32, #tpu.memory_space<vmem>>, %arg14: memref<1x64xf32, #tpu.memory_space<vmem>>, %arg15: memref<64x128xbf16, #tpu.memory_space<vmem>>, %arg16: memref<1x128xf32, #tpu.memory_space<vmem>>, %arg17: memref<4x32xbf16, #tpu.memory_space<vmem>>, %arg18: memref<1x32xf32, #tpu.memory_space<vmem>>, %arg19: memref<32x64xbf16, #tpu.memory_space<vmem>>, %arg20: memref<1x64xf32, #tpu.memory_space<vmem>>, %arg21: memref<1x64xf32, #tpu.memory_space<vmem>>, %arg22: memref<1x64xf32, #tpu.memory_space<vmem>>, %arg23: memref<64x128xbf16, #tpu.memory_space<vmem>>, %arg24: memref<1x128xf32, #tpu.memory_space<vmem>>, %arg25: memref<16x128xf32, #tpu.memory_space<vmem>>, %arg26: memref<16x128xf32, #tpu.memory_space<vmem>>) attributes {dimension_semantics = [#tpu.dimension_semantics<arbitrary>], iteration_bounds = array<i64: 1>, scalar_prefetch = 0 : i64, scratch_operands = 0 : i64, tpu.core_type = #tpu.core_type<tc>, window_params = [{transform_indices = @transform_0, window_bounds = array<i64: 2>}, {pipeline_mode = #tpu.pipeline_mode<synchronous>, transform_indices = @transform_1, window_bounds = array<i64: 16, 64, 4>}, {pipeline_mode = #tpu.pipeline_mode<synchronous>, transform_indices = @transform_2, window_bounds = array<i64: 4, 32>}, {pipeline_mode = #tpu.pipeline_mode<synchronous>, transform_indices = @transform_3, window_bounds = array<i64: 1, 32>}, {pipeline_mode = #tpu.pipeline_mode<synchronous>, transform_indices = @transform_4, window_bounds = array<i64: 32, 64>}, {pipeline_mode = #tpu.pipeline_mode<synchronous>, transform_indices = @transform_5, window_bounds = array<i64: 1, 64>}, {pipeline_mode = #tpu.pipeline_mode<synchronous>, transform_indices = @transform_6, window_bounds = array<i64: 1, 64>}, {pipeline_mode = #tpu.pipeline_mode<synchronous>, transform_indices = @transform_7, window_bounds = array<i64: 1, 64>}, {pipeline_mode = #tpu.pipeline_mode<synchronous>, transform_indices = @transform_8, window_bounds = array<i64: 64, 128>}, {pipeline_mode = #tpu.pipeline_mode<synchronous>, transform_indices = @transform_9, window_bounds = array<i64: 1, 128>}, {pipeline_mode = #tpu.pipeline_mode<synchronous>, transform_indices = @transform_10, window_bounds = array<i64: 128, 64>}, {pipeline_mode = #tpu.pipeline_mode<synchronous>, transform_indices = @transform_11, window_bounds = array<i64: 1, 64>}, {pipeline_mode = #tpu.pipeline_mode<synchronous>, transform_indices = @transform_12, window_bounds = array<i64: 1, 64>}, {pipeline_mode = #tpu.pipeline_mode<synchronous>, transform_indices = @transform_13, window_bounds = array<i64: 1, 64>}, {pipeline_mode = #tpu.pipeline_mode<synchronous>, transform_indices = @transform_14, window_bounds = array<i64: 64, 128>}, {pipeline_mode = #tpu.pipeline_mode<synchronous>, transform_indices = @transform_15, window_bounds = array<i64: 1, 128>}, {pipeline_mode = #tpu.pipeline_mode<synchronous>, transform_indices = @transform_16, window_bounds = array<i64: 4, 32>}, {pipeline_mode = #tpu.pipeline_mode<synchronous>, transform_indices = @transform_17, window_bounds = array<i64: 1, 32>}, {pipeline_mode = #tpu.pipeline_mode<synchronous>, transform_indices = @transform_18, window_bounds = array<i64: 32, 64>}, {pipeline_mode = #tpu.pipeline_mode<synchronous>, transform_indices = @transform_19, window_bounds = array<i64: 1, 64>}, {pipeline_mode = #tpu.pipeline_mode<synchronous>, transform_indices = @transform_20, window_bounds = array<i64: 1, 64>}, {pipeline_mode = #tpu.pipeline_mode<synchronous>, transform_indices = @transform_21, window_bounds = array<i64: 1, 64>}, {pipeline_mode = #tpu.pipeline_mode<synchronous>, transform_indices = @transform_22, window_bounds = array<i64: 64, 128>}, {pipeline_mode = #tpu.pipeline_mode<synchronous>, transform_indices = @transform_23, window_bounds = array<i64: 1, 128>}, {pipeline_mode = #tpu.pipeline_mode<synchronous>, transform_indices = @transform_24, window_bounds = array<i64: 16, 128>}, {pipeline_mode = #tpu.pipeline_mode<synchronous>, transform_indices = @transform_25, window_bounds = array<i64: 16, 128>}]} {
    %c0 = arith.constant 0 : index
    %c0_0 = arith.constant 0 : index
    %c0_1 = arith.constant 0 : index
    %0 = vector.load %arg2[%c0, %c0_0, %c0_1] : memref<16x64x4xbf16, #tpu.memory_space<vmem>>, vector<16x64x4xbf16>
    %1 = arith.extf %0 : vector<16x64x4xbf16> to vector<16x64x4xf32>
    %cst = arith.constant dense<0.000000e+00> : vector<16x4xf32>
    %2 = vector.multi_reduction <add>, %1, %cst [1] : vector<16x64x4xf32> to vector<16x4xf32>
    %3 = arith.truncf %2 : vector<16x4xf32> to vector<16x4xbf16>
    %c0_2 = arith.constant 0 : index
    %c0_3 = arith.constant 0 : index
    %4 = vector.load %arg3[%c0_2, %c0_3] : memref<4x32xbf16, #tpu.memory_space<vmem>>, vector<4x32xbf16>
    %cst_4 = arith.constant dense<0.000000e+00> : vector<16x32xf32>
    %5 = tpu.matmul %3, %4, %cst_4 {dimension_numbers = #tpu.dot_dimension_numbers<[1], [0], [0], [1], [0, 0, 1, 1], [], []>} : vector<16x4xbf16>, vector<4x32xbf16>, vector<16x32xf32> -> vector<16x32xf32>
    %c0_5 = arith.constant 0 : index
    %c0_6 = arith.constant 0 : index
    %6 = vector.load %arg4[%c0_5, %c0_6] : memref<1x32xf32, #tpu.memory_space<vmem>>, vector<1x32xf32>
    %7 = vector.broadcast %6 : vector<1x32xf32> to vector<16x32xf32>
    %8 = arith.addf %5, %7 : vector<16x32xf32>
    %c0_7 = arith.constant 0 : index
    %c0_8 = arith.constant 0 : index
    %9 = vector.load %arg5[%c0_7, %c0_8] : memref<32x64xbf16, #tpu.memory_space<vmem>>, vector<32x64xbf16>
    %c0_9 = arith.constant 0 : index
    %c0_10 = arith.constant 0 : index
    %10 = vector.load %arg6[%c0_9, %c0_10] : memref<1x64xf32, #tpu.memory_space<vmem>>, vector<1x64xf32>
    %c0_11 = arith.constant 0 : index
    %c0_12 = arith.constant 0 : index
    %11 = vector.load %arg7[%c0_11, %c0_12] : memref<1x64xf32, #tpu.memory_space<vmem>>, vector<1x64xf32>
    %c0_13 = arith.constant 0 : index
    %c0_14 = arith.constant 0 : index
    %12 = vector.load %arg8[%c0_13, %c0_14] : memref<1x64xf32, #tpu.memory_space<vmem>>, vector<1x64xf32>
    %c0_15 = arith.constant 0 : index
    %c0_16 = arith.constant 0 : index
    %13 = vector.load %arg9[%c0_15, %c0_16] : memref<64x128xbf16, #tpu.memory_space<vmem>>, vector<64x128xbf16>
    %c0_17 = arith.constant 0 : index
    %c0_18 = arith.constant 0 : index
    %14 = vector.load %arg10[%c0_17, %c0_18] : memref<1x128xf32, #tpu.memory_space<vmem>>, vector<1x128xf32>
    %15 = arith.truncf %8 : vector<16x32xf32> to vector<16x32xbf16>
    %cst_19 = arith.constant dense<0.000000e+00> : vector<16x64xf32>
    %16 = tpu.matmul %15, %9, %cst_19 {dimension_numbers = #tpu.dot_dimension_numbers<[1], [0], [0], [1], [0, 0, 1, 1], [], []>} : vector<16x32xbf16>, vector<32x64xbf16>, vector<16x64xf32> -> vector<16x64xf32>
    %17 = vector.broadcast %10 : vector<1x64xf32> to vector<16x64xf32>
    %18 = arith.addf %16, %17 : vector<16x64xf32>
    %19 = vector.extract_strided_slice %18 {offsets = [0, 0], sizes = [8, 64], strides = [1, 1]} : vector<16x64xf32> to vector<8x64xf32>
    %cst_20 = arith.constant dense<0.000000e+00> : vector<64xf32>
    %20 = vector.multi_reduction <add>, %19, %cst_20 [0] : vector<8x64xf32> to vector<64xf32>
    %21 = vector.shape_cast %20 : vector<64xf32> to vector<1x64xf32>
    %cst_21 = arith.constant 8.000000e+00 : f32
    %22 = vector.broadcast %cst_21 : f32 to vector<1x64xf32>
    %23 = arith.divf %21, %22 : vector<1x64xf32>
    %24 = vector.broadcast %23 : vector<1x64xf32> to vector<8x64xf32>
    %25 = arith.subf %19, %24 : vector<8x64xf32>
    %26 = arith.mulf %25, %25 : vector<8x64xf32>
    %cst_22 = arith.constant dense<0.000000e+00> : vector<64xf32>
    %27 = vector.multi_reduction <add>, %26, %cst_22 [0] : vector<8x64xf32> to vector<64xf32>
    %28 = vector.shape_cast %27 : vector<64xf32> to vector<1x64xf32>
    %cst_23 = arith.constant 8.000000e+00 : f32
    %29 = vector.broadcast %cst_23 : f32 to vector<1x64xf32>
    %30 = arith.divf %28, %29 : vector<1x64xf32>
    %cst_24 = arith.constant 9.99999974E-6 : f32
    %31 = vector.broadcast %cst_24 : f32 to vector<1x64xf32>
    %32 = arith.addf %30, %31 : vector<1x64xf32>
    %33 = math.rsqrt %32 : vector<1x64xf32>
    %34 = vector.broadcast %33 : vector<1x64xf32> to vector<8x64xf32>
    %35 = arith.mulf %25, %34 : vector<8x64xf32>
    %36 = vector.extract_strided_slice %18 {offsets = [8, 0], sizes = [8, 64], strides = [1, 1]} : vector<16x64xf32> to vector<8x64xf32>
    %cst_25 = arith.constant dense<0.000000e+00> : vector<64xf32>
    %37 = vector.multi_reduction <add>, %36, %cst_25 [0] : vector<8x64xf32> to vector<64xf32>
    %38 = vector.shape_cast %37 : vector<64xf32> to vector<1x64xf32>
    %cst_26 = arith.constant 8.000000e+00 : f32
    %39 = vector.broadcast %cst_26 : f32 to vector<1x64xf32>
    %40 = arith.divf %38, %39 : vector<1x64xf32>
    %41 = vector.broadcast %40 : vector<1x64xf32> to vector<8x64xf32>
    %42 = arith.subf %36, %41 : vector<8x64xf32>
    %43 = arith.mulf %42, %42 : vector<8x64xf32>
    %cst_27 = arith.constant dense<0.000000e+00> : vector<64xf32>
    %44 = vector.multi_reduction <add>, %43, %cst_27 [0] : vector<8x64xf32> to vector<64xf32>
    %45 = vector.shape_cast %44 : vector<64xf32> to vector<1x64xf32>
    %cst_28 = arith.constant 8.000000e+00 : f32
    %46 = vector.broadcast %cst_28 : f32 to vector<1x64xf32>
    %47 = arith.divf %45, %46 : vector<1x64xf32>
    %cst_29 = arith.constant 9.99999974E-6 : f32
    %48 = vector.broadcast %cst_29 : f32 to vector<1x64xf32>
    %49 = arith.addf %47, %48 : vector<1x64xf32>
    %50 = math.rsqrt %49 : vector<1x64xf32>
    %51 = vector.broadcast %50 : vector<1x64xf32> to vector<8x64xf32>
    %52 = arith.mulf %42, %51 : vector<8x64xf32>
    %53 = tpu.concatenate %35, %52 in 0 : vector<8x64xf32>, vector<8x64xf32> -> vector<16x64xf32>
    %54 = vector.broadcast %11 : vector<1x64xf32> to vector<16x64xf32>
    %55 = arith.mulf %53, %54 : vector<16x64xf32>
    %56 = vector.broadcast %12 : vector<1x64xf32> to vector<16x64xf32>
    %57 = arith.addf %55, %56 : vector<16x64xf32>
    %cst_30 = arith.constant 0.000000e+00 : f32
    %58 = vector.broadcast %cst_30 : f32 to vector<16x64xf32>
    %59 = arith.maximumf %57, %58 : vector<16x64xf32>
    %60 = arith.truncf %59 : vector<16x64xf32> to vector<16x64xbf16>
    %cst_31 = arith.constant dense<0.000000e+00> : vector<16x128xf32>
    %61 = tpu.matmul %60, %13, %cst_31 {dimension_numbers = #tpu.dot_dimension_numbers<[1], [0], [0], [1], [0, 0, 1, 1], [], []>} : vector<16x64xbf16>, vector<64x128xbf16>, vector<16x128xf32> -> vector<16x128xf32>
    %62 = vector.broadcast %14 : vector<1x128xf32> to vector<16x128xf32>
    %63 = arith.addf %61, %62 : vector<16x128xf32>
    %c0_32 = arith.constant 0 : index
    %c0_33 = arith.constant 0 : index
    %64 = vector.load %arg11[%c0_32, %c0_33] : memref<128x64xbf16, #tpu.memory_space<vmem>>, vector<128x64xbf16>
    %c0_34 = arith.constant 0 : index
    %c0_35 = arith.constant 0 : index
    %65 = vector.load %arg12[%c0_34, %c0_35] : memref<1x64xf32, #tpu.memory_space<vmem>>, vector<1x64xf32>
    %c0_36 = arith.constant 0 : index
    %c0_37 = arith.constant 0 : index
    %66 = vector.load %arg13[%c0_36, %c0_37] : memref<1x64xf32, #tpu.memory_space<vmem>>, vector<1x64xf32>
    %c0_38 = arith.constant 0 : index
    %c0_39 = arith.constant 0 : index
    %67 = vector.load %arg14[%c0_38, %c0_39] : memref<1x64xf32, #tpu.memory_space<vmem>>, vector<1x64xf32>
    %c0_40 = arith.constant 0 : index
    %c0_41 = arith.constant 0 : index
    %68 = vector.load %arg15[%c0_40, %c0_41] : memref<64x128xbf16, #tpu.memory_space<vmem>>, vector<64x128xbf16>
    %c0_42 = arith.constant 0 : index
    %c0_43 = arith.constant 0 : index
    %69 = vector.load %arg16[%c0_42, %c0_43] : memref<1x128xf32, #tpu.memory_space<vmem>>, vector<1x128xf32>
    %70 = arith.truncf %63 : vector<16x128xf32> to vector<16x128xbf16>
    %cst_44 = arith.constant dense<0.000000e+00> : vector<16x64xf32>
    %71 = tpu.matmul %70, %64, %cst_44 {dimension_numbers = #tpu.dot_dimension_numbers<[1], [0], [0], [1], [0, 0, 1, 1], [], []>} : vector<16x128xbf16>, vector<128x64xbf16>, vector<16x64xf32> -> vector<16x64xf32>
    %72 = vector.broadcast %65 : vector<1x64xf32> to vector<16x64xf32>
    %73 = arith.addf %71, %72 : vector<16x64xf32>
    %74 = vector.extract_strided_slice %73 {offsets = [0, 0], sizes = [8, 64], strides = [1, 1]} : vector<16x64xf32> to vector<8x64xf32>
    %cst_45 = arith.constant dense<0.000000e+00> : vector<64xf32>
    %75 = vector.multi_reduction <add>, %74, %cst_45 [0] : vector<8x64xf32> to vector<64xf32>
    %76 = vector.shape_cast %75 : vector<64xf32> to vector<1x64xf32>
    %cst_46 = arith.constant 8.000000e+00 : f32
    %77 = vector.broadcast %cst_46 : f32 to vector<1x64xf32>
    %78 = arith.divf %76, %77 : vector<1x64xf32>
    %79 = vector.broadcast %78 : vector<1x64xf32> to vector<8x64xf32>
    %80 = arith.subf %74, %79 : vector<8x64xf32>
    %81 = arith.mulf %80, %80 : vector<8x64xf32>
    %cst_47 = arith.constant dense<0.000000e+00> : vector<64xf32>
    %82 = vector.multi_reduction <add>, %81, %cst_47 [0] : vector<8x64xf32> to vector<64xf32>
    %83 = vector.shape_cast %82 : vector<64xf32> to vector<1x64xf32>
    %cst_48 = arith.constant 8.000000e+00 : f32
    %84 = vector.broadcast %cst_48 : f32 to vector<1x64xf32>
    %85 = arith.divf %83, %84 : vector<1x64xf32>
    %cst_49 = arith.constant 9.99999974E-6 : f32
    %86 = vector.broadcast %cst_49 : f32 to vector<1x64xf32>
    %87 = arith.addf %85, %86 : vector<1x64xf32>
    %88 = math.rsqrt %87 : vector<1x64xf32>
    %89 = vector.broadcast %88 : vector<1x64xf32> to vector<8x64xf32>
    %90 = arith.mulf %80, %89 : vector<8x64xf32>
    %91 = vector.extract_strided_slice %73 {offsets = [8, 0], sizes = [8, 64], strides = [1, 1]} : vector<16x64xf32> to vector<8x64xf32>
    %cst_50 = arith.constant dense<0.000000e+00> : vector<64xf32>
    %92 = vector.multi_reduction <add>, %91, %cst_50 [0] : vector<8x64xf32> to vector<64xf32>
    %93 = vector.shape_cast %92 : vector<64xf32> to vector<1x64xf32>
    %cst_51 = arith.constant 8.000000e+00 : f32
    %94 = vector.broadcast %cst_51 : f32 to vector<1x64xf32>
    %95 = arith.divf %93, %94 : vector<1x64xf32>
    %96 = vector.broadcast %95 : vector<1x64xf32> to vector<8x64xf32>
    %97 = arith.subf %91, %96 : vector<8x64xf32>
    %98 = arith.mulf %97, %97 : vector<8x64xf32>
    %cst_52 = arith.constant dense<0.000000e+00> : vector<64xf32>
    %99 = vector.multi_reduction <add>, %98, %cst_52 [0] : vector<8x64xf32> to vector<64xf32>
    %100 = vector.shape_cast %99 : vector<64xf32> to vector<1x64xf32>
    %cst_53 = arith.constant 8.000000e+00 : f32
    %101 = vector.broadcast %cst_53 : f32 to vector<1x64xf32>
    %102 = arith.divf %100, %101 : vector<1x64xf32>
    %cst_54 = arith.constant 9.99999974E-6 : f32
    %103 = vector.broadcast %cst_54 : f32 to vector<1x64xf32>
    %104 = arith.addf %102, %103 : vector<1x64xf32>
    %105 = math.rsqrt %104 : vector<1x64xf32>
    %106 = vector.broadcast %105 : vector<1x64xf32> to vector<8x64xf32>
    %107 = arith.mulf %97, %106 : vector<8x64xf32>
    %108 = tpu.concatenate %90, %107 in 0 : vector<8x64xf32>, vector<8x64xf32> -> vector<16x64xf32>
    %109 = vector.broadcast %66 : vector<1x64xf32> to vector<16x64xf32>
    %110 = arith.mulf %108, %109 : vector<16x64xf32>
    %111 = vector.broadcast %67 : vector<1x64xf32> to vector<16x64xf32>
    %112 = arith.addf %110, %111 : vector<16x64xf32>
    %cst_55 = arith.constant 0.000000e+00 : f32
    %113 = vector.broadcast %cst_55 : f32 to vector<16x64xf32>
    %114 = arith.maximumf %112, %113 : vector<16x64xf32>
    %115 = arith.truncf %114 : vector<16x64xf32> to vector<16x64xbf16>
    %cst_56 = arith.constant dense<0.000000e+00> : vector<16x128xf32>
    %116 = tpu.matmul %115, %68, %cst_56 {dimension_numbers = #tpu.dot_dimension_numbers<[1], [0], [0], [1], [0, 0, 1, 1], [], []>} : vector<16x64xbf16>, vector<64x128xbf16>, vector<16x128xf32> -> vector<16x128xf32>
    %117 = vector.broadcast %69 : vector<1x128xf32> to vector<16x128xf32>
    %118 = arith.addf %116, %117 : vector<16x128xf32>
    %c0_57 = arith.constant 0 : index
    %c0_58 = arith.constant 0 : index
    %119 = vector.load %arg25[%c0_57, %c0_58] : memref<16x128xf32, #tpu.memory_space<vmem>>, vector<16x128xf32>
    tpu.vector_store %arg25[%c0_57, %c0_58], %118 {strides = array<i32>} : memref<16x128xf32, #tpu.memory_space<vmem>>, vector<16x128xf32>,
    %120 = vector.extract_strided_slice %2 {offsets = [8, 0], sizes = [8, 4], strides = [1, 1]} : vector<16x4xf32> to vector<8x4xf32>
    %121 = vector.extract_strided_slice %2 {offsets = [0, 0], sizes = [8, 4], strides = [1, 1]} : vector<16x4xf32> to vector<8x4xf32>
    %c0_59 = arith.constant 0 : index
    %122 = memref.load %arg1[%c0_59] : memref<2xf32, #tpu.memory_space<smem>>
    %123 = arith.truncf %120 : vector<8x4xf32> to vector<8x4xbf16>
    %c0_60 = arith.constant 0 : index
    %c0_61 = arith.constant 0 : index
    %124 = vector.load %arg17[%c0_60, %c0_61] : memref<4x32xbf16, #tpu.memory_space<vmem>>, vector<4x32xbf16>
    %125 = arith.extf %124 : vector<4x32xbf16> to vector<4x32xf32>
    %126 = vector.broadcast %122 : f32 to vector<4x32xf32>
    %127 = arith.mulf %126, %125 : vector<4x32xf32>
    %cst_62 = arith.constant 1.000000e+00 : f32
    %128 = arith.subf %cst_62, %122 : f32
    %c0_63 = arith.constant 0 : index
    %c0_64 = arith.constant 0 : index
    %129 = vector.load %arg3[%c0_63, %c0_64] : memref<4x32xbf16, #tpu.memory_space<vmem>>, vector<4x32xbf16>
    %130 = arith.extf %129 : vector<4x32xbf16> to vector<4x32xf32>
    %131 = vector.broadcast %128 : f32 to vector<4x32xf32>
    %132 = arith.mulf %131, %130 : vector<4x32xf32>
    %133 = arith.addf %127, %132 : vector<4x32xf32>
    %134 = arith.truncf %133 : vector<4x32xf32> to vector<4x32xbf16>
    %cst_65 = arith.constant dense<0.000000e+00> : vector<8x32xf32>
    %135 = tpu.matmul %123, %134, %cst_65 {dimension_numbers = #tpu.dot_dimension_numbers<[1], [0], [0], [1], [0, 0, 1, 1], [], []>} : vector<8x4xbf16>, vector<4x32xbf16>, vector<8x32xf32> -> vector<8x32xf32>
    %c0_66 = arith.constant 0 : index
    %c0_67 = arith.constant 0 : index
    %136 = vector.load %arg18[%c0_66, %c0_67] : memref<1x32xf32, #tpu.memory_space<vmem>>, vector<1x32xf32>
    %137 = vector.broadcast %122 : f32 to vector<1x32xf32>
    %138 = arith.mulf %137, %136 : vector<1x32xf32>
    %cst_68 = arith.constant 1.000000e+00 : f32
    %139 = arith.subf %cst_68, %122 : f32
    %c0_69 = arith.constant 0 : index
    %c0_70 = arith.constant 0 : index
    %140 = vector.load %arg4[%c0_69, %c0_70] : memref<1x32xf32, #tpu.memory_space<vmem>>, vector<1x32xf32>
    %141 = vector.broadcast %139 : f32 to vector<1x32xf32>
    %142 = arith.mulf %141, %140 : vector<1x32xf32>
    %143 = arith.addf %138, %142 : vector<1x32xf32>
    %144 = vector.broadcast %143 : vector<1x32xf32> to vector<8x32xf32>
    %145 = arith.addf %135, %144 : vector<8x32xf32>
    %c0_71 = arith.constant 0 : index
    %c0_72 = arith.constant 0 : index
    %146 = vector.load %arg19[%c0_71, %c0_72] : memref<32x64xbf16, #tpu.memory_space<vmem>>, vector<32x64xbf16>
    %147 = arith.extf %146 : vector<32x64xbf16> to vector<32x64xf32>
    %148 = vector.broadcast %122 : f32 to vector<32x64xf32>
    %149 = arith.mulf %148, %147 : vector<32x64xf32>
    %cst_73 = arith.constant 1.000000e+00 : f32
    %150 = arith.subf %cst_73, %122 : f32
    %c0_74 = arith.constant 0 : index
    %c0_75 = arith.constant 0 : index
    %151 = vector.load %arg5[%c0_74, %c0_75] : memref<32x64xbf16, #tpu.memory_space<vmem>>, vector<32x64xbf16>
    %152 = arith.extf %151 : vector<32x64xbf16> to vector<32x64xf32>
    %153 = vector.broadcast %150 : f32 to vector<32x64xf32>
    %154 = arith.mulf %153, %152 : vector<32x64xf32>
    %155 = arith.addf %149, %154 : vector<32x64xf32>
    %156 = arith.truncf %155 : vector<32x64xf32> to vector<32x64xbf16>
    %c0_76 = arith.constant 0 : index
    %c0_77 = arith.constant 0 : index
    %157 = vector.load %arg20[%c0_76, %c0_77] : memref<1x64xf32, #tpu.memory_space<vmem>>, vector<1x64xf32>
    %158 = vector.broadcast %122 : f32 to vector<1x64xf32>
    %159 = arith.mulf %158, %157 : vector<1x64xf32>
    %cst_78 = arith.constant 1.000000e+00 : f32
    %160 = arith.subf %cst_78, %122 : f32
    %c0_79 = arith.constant 0 : index
    %c0_80 = arith.constant 0 : index
    %161 = vector.load %arg6[%c0_79, %c0_80] : memref<1x64xf32, #tpu.memory_space<vmem>>, vector<1x64xf32>
    %162 = vector.broadcast %160 : f32 to vector<1x64xf32>
    %163 = arith.mulf %162, %161 : vector<1x64xf32>
    %164 = arith.addf %159, %163 : vector<1x64xf32>
    %c0_81 = arith.constant 0 : index
    %c0_82 = arith.constant 0 : index
    %165 = vector.load %arg21[%c0_81, %c0_82] : memref<1x64xf32, #tpu.memory_space<vmem>>, vector<1x64xf32>
    %166 = vector.broadcast %122 : f32 to vector<1x64xf32>
    %167 = arith.mulf %166, %165 : vector<1x64xf32>
    %cst_83 = arith.constant 1.000000e+00 : f32
    %168 = arith.subf %cst_83, %122 : f32
    %c0_84 = arith.constant 0 : index
    %c0_85 = arith.constant 0 : index
    %169 = vector.load %arg7[%c0_84, %c0_85] : memref<1x64xf32, #tpu.memory_space<vmem>>, vector<1x64xf32>
    %170 = vector.broadcast %168 : f32 to vector<1x64xf32>
    %171 = arith.mulf %170, %169 : vector<1x64xf32>
    %172 = arith.addf %167, %171 : vector<1x64xf32>
    %c0_86 = arith.constant 0 : index
    %c0_87 = arith.constant 0 : index
    %173 = vector.load %arg22[%c0_86, %c0_87] : memref<1x64xf32, #tpu.memory_space<vmem>>, vector<1x64xf32>
    %174 = vector.broadcast %122 : f32 to vector<1x64xf32>
    %175 = arith.mulf %174, %173 : vector<1x64xf32>
    %cst_88 = arith.constant 1.000000e+00 : f32
    %176 = arith.subf %cst_88, %122 : f32
    %c0_89 = arith.constant 0 : index
    %c0_90 = arith.constant 0 : index
    %177 = vector.load %arg8[%c0_89, %c0_90] : memref<1x64xf32, #tpu.memory_space<vmem>>, vector<1x64xf32>
    %178 = vector.broadcast %176 : f32 to vector<1x64xf32>
    %179 = arith.mulf %178, %177 : vector<1x64xf32>
    %180 = arith.addf %175, %179 : vector<1x64xf32>
    %c0_91 = arith.constant 0 : index
    %c0_92 = arith.constant 0 : index
    %181 = vector.load %arg23[%c0_91, %c0_92] : memref<64x128xbf16, #tpu.memory_space<vmem>>, vector<64x128xbf16>
    %182 = arith.extf %181 : vector<64x128xbf16> to vector<64x128xf32>
    %183 = vector.broadcast %122 : f32 to vector<64x128xf32>
    %184 = arith.mulf %183, %182 : vector<64x128xf32>
    %cst_93 = arith.constant 1.000000e+00 : f32
    %185 = arith.subf %cst_93, %122 : f32
    %c0_94 = arith.constant 0 : index
    %c0_95 = arith.constant 0 : index
    %186 = vector.load %arg9[%c0_94, %c0_95] : memref<64x128xbf16, #tpu.memory_space<vmem>>, vector<64x128xbf16>
    %187 = arith.extf %186 : vector<64x128xbf16> to vector<64x128xf32>
    %188 = vector.broadcast %185 : f32 to vector<64x128xf32>
    %189 = arith.mulf %188, %187 : vector<64x128xf32>
    %190 = arith.addf %184, %189 : vector<64x128xf32>
    %191 = arith.truncf %190 : vector<64x128xf32> to vector<64x128xbf16>
    %c0_96 = arith.constant 0 : index
    %c0_97 = arith.constant 0 : index
    %192 = vector.load %arg24[%c0_96, %c0_97] : memref<1x128xf32, #tpu.memory_space<vmem>>, vector<1x128xf32>
    %193 = vector.broadcast %122 : f32 to vector<1x128xf32>
    %194 = arith.mulf %193, %192 : vector<1x128xf32>
    %cst_98 = arith.constant 1.000000e+00 : f32
    %195 = arith.subf %cst_98, %122 : f32
    %c0_99 = arith.constant 0 : index
    %c0_100 = arith.constant 0 : index
    %196 = vector.load %arg10[%c0_99, %c0_100] : memref<1x128xf32, #tpu.memory_space<vmem>>, vector<1x128xf32>
    %197 = vector.broadcast %195 : f32 to vector<1x128xf32>
    %198 = arith.mulf %197, %196 : vector<1x128xf32>
    %199 = arith.addf %194, %198 : vector<1x128xf32>
    %200 = arith.truncf %145 : vector<8x32xf32> to vector<8x32xbf16>
    %cst_101 = arith.constant dense<0.000000e+00> : vector<8x64xf32>
    %201 = tpu.matmul %200, %156, %cst_101 {dimension_numbers = #tpu.dot_dimension_numbers<[1], [0], [0], [1], [0, 0, 1, 1], [], []>} : vector<8x32xbf16>, vector<32x64xbf16>, vector<8x64xf32> -> vector<8x64xf32>
    %202 = vector.broadcast %164 : vector<1x64xf32> to vector<8x64xf32>
    %203 = arith.addf %201, %202 : vector<8x64xf32>
    %cst_102 = arith.constant dense<0.000000e+00> : vector<64xf32>
    %204 = vector.multi_reduction <add>, %203, %cst_102 [0] : vector<8x64xf32> to vector<64xf32>
    %205 = vector.shape_cast %204 : vector<64xf32> to vector<1x64xf32>
    %cst_103 = arith.constant 8.000000e+00 : f32
    %206 = vector.broadcast %cst_103 : f32 to vector<1x64xf32>
    %207 = arith.divf %205, %206 : vector<1x64xf32>
    %208 = vector.broadcast %207 : vector<1x64xf32> to vector<8x64xf32>
    %209 = arith.subf %203, %208 : vector<8x64xf32>
    %210 = arith.mulf %209, %209 : vector<8x64xf32>
    %cst_104 = arith.constant dense<0.000000e+00> : vector<64xf32>
    %211 = vector.multi_reduction <add>, %210, %cst_104 [0] : vector<8x64xf32> to vector<64xf32>
    %212 = vector.shape_cast %211 : vector<64xf32> to vector<1x64xf32>
    %cst_105 = arith.constant 8.000000e+00 : f32
    %213 = vector.broadcast %cst_105 : f32 to vector<1x64xf32>
    %214 = arith.divf %212, %213 : vector<1x64xf32>
    %cst_106 = arith.constant 9.99999974E-6 : f32
    %215 = vector.broadcast %cst_106 : f32 to vector<1x64xf32>
    %216 = arith.addf %214, %215 : vector<1x64xf32>
    %217 = math.rsqrt %216 : vector<1x64xf32>
    %218 = vector.broadcast %217 : vector<1x64xf32> to vector<8x64xf32>
    %219 = arith.mulf %209, %218 : vector<8x64xf32>
    %220 = vector.broadcast %172 : vector<1x64xf32> to vector<8x64xf32>
    %221 = arith.mulf %219, %220 : vector<8x64xf32>
    %222 = vector.broadcast %180 : vector<1x64xf32> to vector<8x64xf32>
    %223 = arith.addf %221, %222 : vector<8x64xf32>
    %cst_107 = arith.constant 0.000000e+00 : f32
    %224 = vector.broadcast %cst_107 : f32 to vector<8x64xf32>
    %225 = arith.maximumf %223, %224 : vector<8x64xf32>
    %226 = arith.truncf %225 : vector<8x64xf32> to vector<8x64xbf16>
    %cst_108 = arith.constant dense<0.000000e+00> : vector<8x128xf32>
    %227 = tpu.matmul %226, %191, %cst_108 {dimension_numbers = #tpu.dot_dimension_numbers<[1], [0], [0], [1], [0, 0, 1, 1], [], []>} : vector<8x64xbf16>, vector<64x128xbf16>, vector<8x128xf32> -> vector<8x128xf32>
    %228 = vector.broadcast %199 : vector<1x128xf32> to vector<8x128xf32>
    %229 = arith.addf %227, %228 : vector<8x128xf32>
    %c0_109 = arith.constant 0 : index
    %c0_110 = arith.constant 0 : index
    %230 = vector.load %arg26[%c0_109, %c0_110] : memref<16x128xf32, #tpu.memory_space<vmem>>, vector<8x128xf32>
    tpu.vector_store %arg26[%c0_109, %c0_110], %229 {strides = array<i32>} : memref<16x128xf32, #tpu.memory_space<vmem>>, vector<8x128xf32>,
    %c1 = arith.constant 1 : index
    %231 = memref.load %arg1[%c1] : memref<2xf32, #tpu.memory_space<smem>>
    %232 = arith.truncf %121 : vector<8x4xf32> to vector<8x4xbf16>
    %c0_111 = arith.constant 0 : index
    %c0_112 = arith.constant 0 : index
    %233 = vector.load %arg17[%c0_111, %c0_112] : memref<4x32xbf16, #tpu.memory_space<vmem>>, vector<4x32xbf16>
    %234 = arith.extf %233 : vector<4x32xbf16> to vector<4x32xf32>
    %235 = vector.broadcast %231 : f32 to vector<4x32xf32>
    %236 = arith.mulf %235, %234 : vector<4x32xf32>
    %cst_113 = arith.constant 1.000000e+00 : f32
    %237 = arith.subf %cst_113, %231 : f32
    %c0_114 = arith.constant 0 : index
    %c0_115 = arith.constant 0 : index
    %238 = vector.load %arg3[%c0_114, %c0_115] : memref<4x32xbf16, #tpu.memory_space<vmem>>, vector<4x32xbf16>
    %239 = arith.extf %238 : vector<4x32xbf16> to vector<4x32xf32>
    %240 = vector.broadcast %237 : f32 to vector<4x32xf32>
    %241 = arith.mulf %240, %239 : vector<4x32xf32>
    %242 = arith.addf %236, %241 : vector<4x32xf32>
    %243 = arith.truncf %242 : vector<4x32xf32> to vector<4x32xbf16>
    %cst_116 = arith.constant dense<0.000000e+00> : vector<8x32xf32>
    %244 = tpu.matmul %232, %243, %cst_116 {dimension_numbers = #tpu.dot_dimension_numbers<[1], [0], [0], [1], [0, 0, 1, 1], [], []>} : vector<8x4xbf16>, vector<4x32xbf16>, vector<8x32xf32> -> vector<8x32xf32>
    %c0_117 = arith.constant 0 : index
    %c0_118 = arith.constant 0 : index
    %245 = vector.load %arg18[%c0_117, %c0_118] : memref<1x32xf32, #tpu.memory_space<vmem>>, vector<1x32xf32>
    %246 = vector.broadcast %231 : f32 to vector<1x32xf32>
    %247 = arith.mulf %246, %245 : vector<1x32xf32>
    %cst_119 = arith.constant 1.000000e+00 : f32
    %248 = arith.subf %cst_119, %231 : f32
    %c0_120 = arith.constant 0 : index
    %c0_121 = arith.constant 0 : index
    %249 = vector.load %arg4[%c0_120, %c0_121] : memref<1x32xf32, #tpu.memory_space<vmem>>, vector<1x32xf32>
    %250 = vector.broadcast %248 : f32 to vector<1x32xf32>
    %251 = arith.mulf %250, %249 : vector<1x32xf32>
    %252 = arith.addf %247, %251 : vector<1x32xf32>
    %253 = vector.broadcast %252 : vector<1x32xf32> to vector<8x32xf32>
    %254 = arith.addf %244, %253 : vector<8x32xf32>
    %c0_122 = arith.constant 0 : index
    %c0_123 = arith.constant 0 : index
    %255 = vector.load %arg19[%c0_122, %c0_123] : memref<32x64xbf16, #tpu.memory_space<vmem>>, vector<32x64xbf16>
    %256 = arith.extf %255 : vector<32x64xbf16> to vector<32x64xf32>
    %257 = vector.broadcast %231 : f32 to vector<32x64xf32>
    %258 = arith.mulf %257, %256 : vector<32x64xf32>
    %cst_124 = arith.constant 1.000000e+00 : f32
    %259 = arith.subf %cst_124, %231 : f32
    %c0_125 = arith.constant 0 : index
    %c0_126 = arith.constant 0 : index
    %260 = vector.load %arg5[%c0_125, %c0_126] : memref<32x64xbf16, #tpu.memory_space<vmem>>, vector<32x64xbf16>
    %261 = arith.extf %260 : vector<32x64xbf16> to vector<32x64xf32>
    %262 = vector.broadcast %259 : f32 to vector<32x64xf32>
    %263 = arith.mulf %262, %261 : vector<32x64xf32>
    %264 = arith.addf %258, %263 : vector<32x64xf32>
    %265 = arith.truncf %264 : vector<32x64xf32> to vector<32x64xbf16>
    %c0_127 = arith.constant 0 : index
    %c0_128 = arith.constant 0 : index
    %266 = vector.load %arg20[%c0_127, %c0_128] : memref<1x64xf32, #tpu.memory_space<vmem>>, vector<1x64xf32>
    %267 = vector.broadcast %231 : f32 to vector<1x64xf32>
    %268 = arith.mulf %267, %266 : vector<1x64xf32>
    %cst_129 = arith.constant 1.000000e+00 : f32
    %269 = arith.subf %cst_129, %231 : f32
    %c0_130 = arith.constant 0 : index
    %c0_131 = arith.constant 0 : index
    %270 = vector.load %arg6[%c0_130, %c0_131] : memref<1x64xf32, #tpu.memory_space<vmem>>, vector<1x64xf32>
    %271 = vector.broadcast %269 : f32 to vector<1x64xf32>
    %272 = arith.mulf %271, %270 : vector<1x64xf32>
    %273 = arith.addf %268, %272 : vector<1x64xf32>
    %c0_132 = arith.constant 0 : index
    %c0_133 = arith.constant 0 : index
    %274 = vector.load %arg21[%c0_132, %c0_133] : memref<1x64xf32, #tpu.memory_space<vmem>>, vector<1x64xf32>
    %275 = vector.broadcast %231 : f32 to vector<1x64xf32>
    %276 = arith.mulf %275, %274 : vector<1x64xf32>
    %cst_134 = arith.constant 1.000000e+00 : f32
    %277 = arith.subf %cst_134, %231 : f32
    %c0_135 = arith.constant 0 : index
    %c0_136 = arith.constant 0 : index
    %278 = vector.load %arg7[%c0_135, %c0_136] : memref<1x64xf32, #tpu.memory_space<vmem>>, vector<1x64xf32>
    %279 = vector.broadcast %277 : f32 to vector<1x64xf32>
    %280 = arith.mulf %279, %278 : vector<1x64xf32>
    %281 = arith.addf %276, %280 : vector<1x64xf32>
    %c0_137 = arith.constant 0 : index
    %c0_138 = arith.constant 0 : index
    %282 = vector.load %arg22[%c0_137, %c0_138] : memref<1x64xf32, #tpu.memory_space<vmem>>, vector<1x64xf32>
    %283 = vector.broadcast %231 : f32 to vector<1x64xf32>
    %284 = arith.mulf %283, %282 : vector<1x64xf32>
    %cst_139 = arith.constant 1.000000e+00 : f32
    %285 = arith.subf %cst_139, %231 : f32
    %c0_140 = arith.constant 0 : index
    %c0_141 = arith.constant 0 : index
    %286 = vector.load %arg8[%c0_140, %c0_141] : memref<1x64xf32, #tpu.memory_space<vmem>>, vector<1x64xf32>
    %287 = vector.broadcast %285 : f32 to vector<1x64xf32>
    %288 = arith.mulf %287, %286 : vector<1x64xf32>
    %289 = arith.addf %284, %288 : vector<1x64xf32>
    %c0_142 = arith.constant 0 : index
    %c0_143 = arith.constant 0 : index
    %290 = vector.load %arg23[%c0_142, %c0_143] : memref<64x128xbf16, #tpu.memory_space<vmem>>, vector<64x128xbf16>
    %291 = arith.extf %290 : vector<64x128xbf16> to vector<64x128xf32>
    %292 = vector.broadcast %231 : f32 to vector<64x128xf32>
    %293 = arith.mulf %292, %291 : vector<64x128xf32>
    %cst_144 = arith.constant 1.000000e+00 : f32
    %294 = arith.subf %cst_144, %231 : f32
    %c0_145 = arith.constant 0 : index
    %c0_146 = arith.constant 0 : index
    %295 = vector.load %arg9[%c0_145, %c0_146] : memref<64x128xbf16, #tpu.memory_space<vmem>>, vector<64x128xbf16>
    %296 = arith.extf %295 : vector<64x128xbf16> to vector<64x128xf32>
    %297 = vector.broadcast %294 : f32 to vector<64x128xf32>
    %298 = arith.mulf %297, %296 : vector<64x128xf32>
    %299 = arith.addf %293, %298 : vector<64x128xf32>
    %300 = arith.truncf %299 : vector<64x128xf32> to vector<64x128xbf16>
    %c0_147 = arith.constant 0 : index
    %c0_148 = arith.constant 0 : index
    %301 = vector.load %arg24[%c0_147, %c0_148] : memref<1x128xf32, #tpu.memory_space<vmem>>, vector<1x128xf32>
    %302 = vector.broadcast %231 : f32 to vector<1x128xf32>
    %303 = arith.mulf %302, %301 : vector<1x128xf32>
    %cst_149 = arith.constant 1.000000e+00 : f32
    %304 = arith.subf %cst_149, %231 : f32
    %c0_150 = arith.constant 0 : index
    %c0_151 = arith.constant 0 : index
    %305 = vector.load %arg10[%c0_150, %c0_151] : memref<1x128xf32, #tpu.memory_space<vmem>>, vector<1x128xf32>
    %306 = vector.broadcast %304 : f32 to vector<1x128xf32>
    %307 = arith.mulf %306, %305 : vector<1x128xf32>
    %308 = arith.addf %303, %307 : vector<1x128xf32>
    %309 = arith.truncf %254 : vector<8x32xf32> to vector<8x32xbf16>
    %cst_152 = arith.constant dense<0.000000e+00> : vector<8x64xf32>
    %310 = tpu.matmul %309, %265, %cst_152 {dimension_numbers = #tpu.dot_dimension_numbers<[1], [0], [0], [1], [0, 0, 1, 1], [], []>} : vector<8x32xbf16>, vector<32x64xbf16>, vector<8x64xf32> -> vector<8x64xf32>
    %311 = vector.broadcast %273 : vector<1x64xf32> to vector<8x64xf32>
    %312 = arith.addf %310, %311 : vector<8x64xf32>
    %cst_153 = arith.constant dense<0.000000e+00> : vector<64xf32>
    %313 = vector.multi_reduction <add>, %312, %cst_153 [0] : vector<8x64xf32> to vector<64xf32>
    %314 = vector.shape_cast %313 : vector<64xf32> to vector<1x64xf32>
    %cst_154 = arith.constant 8.000000e+00 : f32
    %315 = vector.broadcast %cst_154 : f32 to vector<1x64xf32>
    %316 = arith.divf %314, %315 : vector<1x64xf32>
    %317 = vector.broadcast %316 : vector<1x64xf32> to vector<8x64xf32>
    %318 = arith.subf %312, %317 : vector<8x64xf32>
    %319 = arith.mulf %318, %318 : vector<8x64xf32>
    %cst_155 = arith.constant dense<0.000000e+00> : vector<64xf32>
    %320 = vector.multi_reduction <add>, %319, %cst_155 [0] : vector<8x64xf32> to vector<64xf32>
    %321 = vector.shape_cast %320 : vector<64xf32> to vector<1x64xf32>
    %cst_156 = arith.constant 8.000000e+00 : f32
    %322 = vector.broadcast %cst_156 : f32 to vector<1x64xf32>
    %323 = arith.divf %321, %322 : vector<1x64xf32>
    %cst_157 = arith.constant 9.99999974E-6 : f32
    %324 = vector.broadcast %cst_157 : f32 to vector<1x64xf32>
    %325 = arith.addf %323, %324 : vector<1x64xf32>
    %326 = math.rsqrt %325 : vector<1x64xf32>
    %327 = vector.broadcast %326 : vector<1x64xf32> to vector<8x64xf32>
    %328 = arith.mulf %318, %327 : vector<8x64xf32>
    %329 = vector.broadcast %281 : vector<1x64xf32> to vector<8x64xf32>
    %330 = arith.mulf %328, %329 : vector<8x64xf32>
    %331 = vector.broadcast %289 : vector<1x64xf32> to vector<8x64xf32>
    %332 = arith.addf %330, %331 : vector<8x64xf32>
    %cst_158 = arith.constant 0.000000e+00 : f32
    %333 = vector.broadcast %cst_158 : f32 to vector<8x64xf32>
    %334 = arith.maximumf %332, %333 : vector<8x64xf32>
    %335 = arith.truncf %334 : vector<8x64xf32> to vector<8x64xbf16>
    %cst_159 = arith.constant dense<0.000000e+00> : vector<8x128xf32>
    %336 = tpu.matmul %335, %300, %cst_159 {dimension_numbers = #tpu.dot_dimension_numbers<[1], [0], [0], [1], [0, 0, 1, 1], [], []>} : vector<8x64xbf16>, vector<64x128xbf16>, vector<8x128xf32> -> vector<8x128xf32>
    %337 = vector.broadcast %308 : vector<1x128xf32> to vector<8x128xf32>
    %338 = arith.addf %336, %337 : vector<8x128xf32>
    %c8 = arith.constant 8 : index
    %c0_160 = arith.constant 0 : index
    %339 = vector.load %arg26[%c8, %c0_160] : memref<16x128xf32, #tpu.memory_space<vmem>>, vector<8x128xf32>
    tpu.vector_store %arg26[%c8, %c0_160], %338 {strides = array<i32>} : memref<16x128xf32, #tpu.memory_space<vmem>>, vector<8x128xf32>,
    return
  }
  func.func @transform_0(%arg0: i32) -> i32 {
    %c0_i32 = arith.constant 0 : i32
    %c0_i32_0 = arith.constant 0 : i32
    return %c0_i32 : i32
  }
  func.func @transform_1(%arg0: i32) -> (i32, i32, i32) {
    %c0_i32 = arith.constant 0 : i32
    %c0_i32_0 = arith.constant 0 : i32
    %c0_i32_1 = arith.constant 0 : i32
    %c0_i32_2 = arith.constant 0 : i32
    return %c0_i32, %c0_i32_0, %c0_i32_1 : i32, i32, i32
  }
  func.func @transform_2(%arg0: i32) -> (i32, i32) {
    %c0_i32 = arith.constant 0 : i32
    %c0_i32_0 = arith.constant 0 : i32
    %c0_i32_1 = arith.constant 0 : i32
    return %c0_i32, %c0_i32_0 : i32, i32
  }
  func.func @transform_3(%arg0: i32) -> (i32, i32) {
    %c0_i32 = arith.constant 0 : i32
    %c0_i32_0 = arith.constant 0 : i32
    %c0_i32_1 = arith.constant 0 : i32
    return %c0_i32, %c0_i32_0 : i32, i32
  }
  func.func @transform_4(%arg0: i32) -> (i32, i32) {
    %c0_i32 = arith.constant 0 : i32
    %c0_i32_0 = arith.constant 0 : i32
    %c0_i32_1 = arith.constant 0 : i32
    return %c0_i32, %c0_i32_0 : i32, i32
  }
  func.func @transform_5(%arg0: i32) -> (i32, i32) {
    %c0_i32 = arith.constant 0 : i32
    %c0_i32_0 = arith.constant 0 : i32
    %c0_i32_1 = arith.constant 0 : i32
    return %c0_i32, %c0_i32_0 : i32, i32
  }
  func.func @transform_6(%arg0: i32) -> (i32, i32) {
    %c0_i32 = arith.constant 0 : i32
    %c0_i32_0 = arith.constant 0 : i32
    %c0_i32_1 = arith.constant 0 : i32
    return %c0_i32, %c0_i32_0 : i32, i32
  }
  func.func @transform_7(%arg0: i32) -> (i32, i32) {
    %c0_i32 = arith.constant 0 : i32
    %c0_i32_0 = arith.constant 0 : i32
    %c0_i32_1 = arith.constant 0 : i32
    return %c0_i32, %c0_i32_0 : i32, i32
  }
  func.func @transform_8(%arg0: i32) -> (i32, i32) {
    %c0_i32 = arith.constant 0 : i32
    %c0_i32_0 = arith.constant 0 : i32
    %c0_i32_1 = arith.constant 0 : i32
    return %c0_i32, %c0_i32_0 : i32, i32
  }
  func.func @transform_9(%arg0: i32) -> (i32, i32) {
    %c0_i32 = arith.constant 0 : i32
    %c0_i32_0 = arith.constant 0 : i32
    %c0_i32_1 = arith.constant 0 : i32
    return %c0_i32, %c0_i32_0 : i32, i32
  }
  func.func @transform_10(%arg0: i32) -> (i32, i32) {
    %c0_i32 = arith.constant 0 : i32
    %c0_i32_0 = arith.constant 0 : i32
    %c0_i32_1 = arith.constant 0 : i32
    return %c0_i32, %c0_i32_0 : i32, i32
  }
  func.func @transform_11(%arg0: i32) -> (i32, i32) {
    %c0_i32 = arith.constant 0 : i32
    %c0_i32_0 = arith.constant 0 : i32
    %c0_i32_1 = arith.constant 0 : i32
    return %c0_i32, %c0_i32_0 : i32, i32
  }
  func.func @transform_12(%arg0: i32) -> (i32, i32) {
    %c0_i32 = arith.constant 0 : i32
    %c0_i32_0 = arith.constant 0 : i32
    %c0_i32_1 = arith.constant 0 : i32
    return %c0_i32, %c0_i32_0 : i32, i32
  }
  func.func @transform_13(%arg0: i32) -> (i32, i32) {
    %c0_i32 = arith.constant 0 : i32
    %c0_i32_0 = arith.constant 0 : i32
    %c0_i32_1 = arith.constant 0 : i32
    return %c0_i32, %c0_i32_0 : i32, i32
  }
  func.func @transform_14(%arg0: i32) -> (i32, i32) {
    %c0_i32 = arith.constant 0 : i32
    %c0_i32_0 = arith.constant 0 : i32
    %c0_i32_1 = arith.constant 0 : i32
    return %c0_i32, %c0_i32_0 : i32, i32
  }
  func.func @transform_15(%arg0: i32) -> (i32, i32) {
    %c0_i32 = arith.constant 0 : i32
    %c0_i32_0 = arith.constant 0 : i32
    %c0_i32_1 = arith.constant 0 : i32
    return %c0_i32, %c0_i32_0 : i32, i32
  }
  func.func @transform_16(%arg0: i32) -> (i32, i32) {
    %c0_i32 = arith.constant 0 : i32
    %c0_i32_0 = arith.constant 0 : i32
    %c0_i32_1 = arith.constant 0 : i32
    return %c0_i32, %c0_i32_0 : i32, i32
  }
  func.func @transform_17(%arg0: i32) -> (i32, i32) {
    %c0_i32 = arith.constant 0 : i32
    %c0_i32_0 = arith.constant 0 : i32
    %c0_i32_1 = arith.constant 0 : i32
    return %c0_i32, %c0_i32_0 : i32, i32
  }
  func.func @transform_18(%arg0: i32) -> (i32, i32) {
    %c0_i32 = arith.constant 0 : i32
    %c0_i32_0 = arith.constant 0 : i32
    %c0_i32_1 = arith.constant 0 : i32
    return %c0_i32, %c0_i32_0 : i32, i32
  }
  func.func @transform_19(%arg0: i32) -> (i32, i32) {
    %c0_i32 = arith.constant 0 : i32
    %c0_i32_0 = arith.constant 0 : i32
    %c0_i32_1 = arith.constant 0 : i32
    return %c0_i32, %c0_i32_0 : i32, i32
  }
  func.func @transform_20(%arg0: i32) -> (i32, i32) {
    %c0_i32 = arith.constant 0 : i32
    %c0_i32_0 = arith.constant 0 : i32
    %c0_i32_1 = arith.constant 0 : i32
    return %c0_i32, %c0_i32_0 : i32, i32
  }
  func.func @transform_21(%arg0: i32) -> (i32, i32) {
    %c0_i32 = arith.constant 0 : i32
    %c0_i32_0 = arith.constant 0 : i32
    %c0_i32_1 = arith.constant 0 : i32
    return %c0_i32, %c0_i32_0 : i32, i32
  }
  func.func @transform_22(%arg0: i32) -> (i32, i32) {
    %c0_i32 = arith.constant 0 : i32
    %c0_i32_0 = arith.constant 0 : i32
    %c0_i32_1 = arith.constant 0 : i32
    return %c0_i32, %c0_i32_0 : i32, i32
  }
  func.func @transform_23(%arg0: i32) -> (i32, i32) {
    %c0_i32 = arith.constant 0 : i32
    %c0_i32_0 = arith.constant 0 : i32
    %c0_i32_1 = arith.constant 0 : i32
    return %c0_i32, %c0_i32_0 : i32, i32
  }
  func.func @transform_24(%arg0: i32) -> (i32, i32) {
    %c0_i32 = arith.constant 0 : i32
    %c0_i32_0 = arith.constant 0 : i32
    %c0_i32_1 = arith.constant 0 : i32
    return %c0_i32, %c0_i32_0 : i32, i32
  }
  func.func @transform_25(%arg0: i32) -> (i32, i32) {
    %c0_i32 = arith.constant 0 : i32
    %c0_i32_0 = arith.constant 0 : i32
    %c0_i32_1 = arith.constant 0 : i32
    return %c0_i32, %c0_i32_0 : i32, i32
  }
}

</mosaic_0001>

<llo_original>
// kernel: _byol_forward_impl.1
$region0: #{_byol_forward_impl.1}
  #allocation0 [shape = 'u32[]', space=smem, size = 0x4, offset = 0x4, fixed_abs, tag = 'smem constant byte address 0x4 - core index']
  #allocation1 [shape = 'u32[72,128]{1,0:T(1,128)}', space=vmem, size = 0x9000, scoped, tag = 'internal scratch']
  %s0 = inlined_call_operand.vmem [shape: f32[2], index: 0, kind: input, shape index: {}]
  %s1 = inlined_call_operand.vmem [shape: bf16[16,64,4], index: 1, kind: input, shape index: {}]
  %s2 = inlined_call_operand.vmem [shape: bf16[4,32], index: 2, kind: input, shape index: {}]
  %s3 = inlined_call_operand.vmem [shape: f32[1,32], index: 3, kind: input, shape index: {}]
  %s4 = inlined_call_operand.vmem [shape: bf16[32,64], index: 4, kind: input, shape index: {}]
  %s5 = inlined_call_operand.vmem [shape: f32[1,64], index: 5, kind: input, shape index: {}]
  %s6 = inlined_call_operand.vmem [shape: f32[1,64], index: 6, kind: input, shape index: {}]
  %s7 = inlined_call_operand.vmem [shape: f32[1,64], index: 7, kind: input, shape index: {}]
  %s8 = inlined_call_operand.vmem [shape: bf16[64,128], index: 8, kind: input, shape index: {}]
  %s9 = inlined_call_operand.vmem [shape: f32[1,128], index: 9, kind: input, shape index: {}]
  %s10 = inlined_call_operand.vmem [shape: bf16[128,64], index: 10, kind: input, shape index: {}]
  %s11 = inlined_call_operand.vmem [shape: f32[1,64], index: 11, kind: input, shape index: {}]
  %s12 = inlined_call_operand.vmem [shape: f32[1,64], index: 12, kind: input, shape index: {}]
  %s13 = inlined_call_operand.vmem [shape: f32[1,64], index: 13, kind: input, shape index: {}]
  %s14 = inlined_call_operand.vmem [shape: bf16[64,128], index: 14, kind: input, shape index: {}]
  %s15 = inlined_call_operand.vmem [shape: f32[1,128], index: 15, kind: input, shape index: {}]
  %s16 = inlined_call_operand.vmem [shape: bf16[4,32], index: 16, kind: input, shape index: {}]
  %s17 = inlined_call_operand.vmem [shape: f32[1,32], index: 17, kind: input, shape index: {}]
  %s18 = inlined_call_operand.vmem [shape: bf16[32,64], index: 18, kind: input, shape index: {}]
  %s19 = inlined_call_operand.vmem [shape: f32[1,64], index: 19, kind: input, shape index: {}]
  %s20 = inlined_call_operand.vmem [shape: f32[1,64], index: 20, kind: input, shape index: {}]
  %s21 = inlined_call_operand.vmem [shape: f32[1,64], index: 21, kind: input, shape index: {}]
  %s22 = inlined_call_operand.vmem [shape: bf16[64,128], index: 22, kind: input, shape index: {}]
  %s23 = inlined_call_operand.vmem [shape: f32[1,128], index: 23, kind: input, shape index: {}]
  %s24 = inlined_call_operand.vmem [shape: f32[16,128], index: 24, kind: output, shape index: {0}]
  %s25 = inlined_call_operand.vmem [shape: f32[16,128], index: 25, kind: output, shape index: {1}]
  %26 = xla_tuple %s24, %s25
  %s27 = sld [smem:[#allocation0]]
  $region118: #{_byol_forward_impl.1} parent=0
    _
  %s29 = ssub.s32 1, %s27
  %s30 = scalar_select 0, %s29, %s27
  $region1: #{_byol_forward_impl.1} parent=0
    #allocation2 [shape = 'u8[512]{0}', space=smem, size = 0x200, scoped, tag = 'input window, operand 0, single buffered']
    #allocation3 [shape = 's32[1]{0}', space=sflag, size = 0x4, scoped, tag = 'scoped memory for _byol_forward_impl.1']
    %31 = vsyncpa [#allocation3], 0
    // Predicated region
    $region2: #{_byol_forward_impl.1} parent=1 // pred_check
      _
    $region3: #{_byol_forward_impl.1} parent=1 // pred_check_branch
      %33 = sbr.rel (0) target = $region5
    $region4: #{_byol_forward_impl.1} parent=1 // pred_region
      %35 = vsyncadd [#allocation3], 0
      %s37 = sshll.u32 %s0, 4
      %s38 = int_to_ptr.vmem [resolvable:$true] %s37
      %40 = dma.vmem_to_smem %s38, 16, [#allocation2], [#allocation3]
    $region5: #{_byol_forward_impl.1} parent=1 // pred_fallthru
      _
    // Predicated region
    $region6: #{_byol_forward_impl.1} parent=1 // pred_check
      _
    $region7: #{_byol_forward_impl.1} parent=1 // pred_check_branch
      %42 = sbr.rel (0) target = $region9
    $region8: #{_byol_forward_impl.1} parent=1 // pred_region
      _
    $region9: #{_byol_forward_impl.1} parent=1 // pred_fallthru
      _
    // Predicated region
    $region10: #{_byol_forward_impl.1} parent=1 // pred_check
      _
    $region11: #{_byol_forward_impl.1} parent=1 // pred_check_branch
      %44 = sbr.rel (0) target = $region13
    $region12: #{_byol_forward_impl.1} parent=1 // pred_region
      _
    $region13: #{_byol_forward_impl.1} parent=1 // pred_fallthru
      _
    // Predicated region
    $region14: #{_byol_forward_impl.1} parent=1 // pred_check
      _
    $region15: #{_byol_forward_impl.1} parent=1 // pred_check_branch
      %46 = sbr.rel (0) target = $region17
    $region16: #{_byol_forward_impl.1} parent=1 // pred_region
      _
    $region17: #{_byol_forward_impl.1} parent=1 // pred_fallthru
      _
    // Predicated region
    $region18: #{_byol_forward_impl.1} parent=1 // pred_check
      _
    $region19: #{_byol_forward_impl.1} parent=1 // pred_check_branch
      %48 = sbr.rel (0) target = $region21
    $region20: #{_byol_forward_impl.1} parent=1 // pred_region
      _
    $region21: #{_byol_forward_impl.1} parent=1 // pred_fallthru
      _
    // Predicated region
    $region22: #{_byol_forward_impl.1} parent=1 // pred_check
      _
    $region23: #{_byol_forward_impl.1} parent=1 // pred_check_branch
      %50 = sbr.rel (0) target = $region25
    $region24: #{_byol_forward_impl.1} parent=1 // pred_region
      _
    $region25: #{_byol_forward_impl.1} parent=1 // pred_fallthru
      _
    // Predicated region
    $region26: #{_byol_forward_impl.1} parent=1 // pred_check
      _
    $region27: #{_byol_forward_impl.1} parent=1 // pred_check_branch
      %52 = sbr.rel (0) target = $region29
    $region28: #{_byol_forward_impl.1} parent=1 // pred_region
      _
    $region29: #{_byol_forward_impl.1} parent=1 // pred_fallthru
      _
    // Predicated region
    $region30: #{_byol_forward_impl.1} parent=1 // pred_check
      _
    $region31: #{_byol_forward_impl.1} parent=1 // pred_check_branch
      %54 = sbr.rel (0) target = $region33
    $region32: #{_byol_forward_impl.1} parent=1 // pred_region
      _
    $region33: #{_byol_forward_impl.1} parent=1 // pred_fallthru
      _
    // Predicated region
    $region34: #{_byol_forward_impl.1} parent=1 // pred_check
      _
    $region35: #{_byol_forward_impl.1} parent=1 // pred_check_branch
      %56 = sbr.rel (0) target = $region37
    $region36: #{_byol_forward_impl.1} parent=1 // pred_region
      _
    $region37: #{_byol_forward_impl.1} parent=1 // pred_fallthru
      _
    // Predicated region
    $region38: #{_byol_forward_impl.1} parent=1 // pred_check
      _
    $region39: #{_byol_forward_impl.1} parent=1 // pred_check_branch
      %58 = sbr.rel (0) target = $region41
    $region40: #{_byol_forward_impl.1} parent=1 // pred_region
      _
    $region41: #{_byol_forward_impl.1} parent=1 // pred_fallthru
      _
    // Predicated region
    $region42: #{_byol_forward_impl.1} parent=1 // pred_check
      _
    $region43: #{_byol_forward_impl.1} parent=1 // pred_check_branch
      %60 = sbr.rel (0) target = $region45
    $region44: #{_byol_forward_impl.1} parent=1 // pred_region
      _
    $region45: #{_byol_forward_impl.1} parent=1 // pred_fallthru
      _
    // Predicated region
    $region46: #{_byol_forward_impl.1} parent=1 // pred_check
      _
    $region47: #{_byol_forward_impl.1} parent=1 // pred_check_branch
      %62 = sbr.rel (0) target = $region49
    $region48: #{_byol_forward_impl.1} parent=1 // pred_region
      _
    $region49: #{_byol_forward_impl.1} parent=1 // pred_fallthru
      _
    // Predicated region
    $region50: #{_byol_forward_impl.1} parent=1 // pred_check
      _
    $region51: #{_byol_forward_impl.1} parent=1 // pred_check_branch
      %64 = sbr.rel (0) target = $region53
    $region52: #{_byol_forward_impl.1} parent=1 // pred_region
      _
    $region53: #{_byol_forward_impl.1} parent=1 // pred_fallthru
      _
    // Predicated region
    $region54: #{_byol_forward_impl.1} parent=1 // pred_check
      _
    $region55: #{_byol_forward_impl.1} parent=1 // pred_check_branch
      %66 = sbr.rel (0) target = $region57
    $region56: #{_byol_forward_impl.1} parent=1 // pred_region
      _
    $region57: #{_byol_forward_impl.1} parent=1 // pred_fallthru
      _
    // Predicated region
    $region58: #{_byol_forward_impl.1} parent=1 // pred_check
      _
    $region59: #{_byol_forward_impl.1} parent=1 // pred_check_branch
      %68 = sbr.rel (0) target = $region61
    $region60: #{_byol_forward_impl.1} parent=1 // pred_region
      _
    $region61: #{_byol_forward_impl.1} parent=1 // pred_fallthru
      _
    // Predicated region
    $region62: #{_byol_forward_impl.1} parent=1 // pred_check
      _
    $region63: #{_byol_forward_impl.1} parent=1 // pred_check_branch
      %70 = sbr.rel (0) target = $region65
    $region64: #{_byol_forward_impl.1} parent=1 // pred_region
      _
    $region65: #{_byol_forward_impl.1} parent=1 // pred_fallthru
      _
    // Predicated region
    $region66: #{_byol_forward_impl.1} parent=1 // pred_check
      _
    $region67: #{_byol_forward_impl.1} parent=1 // pred_check_branch
      %72 = sbr.rel (0) target = $region69
    $region68: #{_byol_forward_impl.1} parent=1 // pred_region
      _
    $region69: #{_byol_forward_impl.1} parent=1 // pred_fallthru
      _
    // Predicated region
    $region70: #{_byol_forward_impl.1} parent=1 // pred_check
      _
    $region71: #{_byol_forward_impl.1} parent=1 // pred_check_branch
      %74 = sbr.rel (0) target = $region73
    $region72: #{_byol_forward_impl.1} parent=1 // pred_region
      _
    $region73: #{_byol_forward_impl.1} parent=1 // pred_fallthru
      _
    // Predicated region
    $region74: #{_byol_forward_impl.1} parent=1 // pred_check
      _
    $region75: #{_byol_forward_impl.1} parent=1 // pred_check_branch
      %76 = sbr.rel (0) target = $region77
    $region76: #{_byol_forward_impl.1} parent=1 // pred_region
      _
    $region77: #{_byol_forward_impl.1} parent=1 // pred_fallthru
      _
    // Predicated region
    $region78: #{_byol_forward_impl.1} parent=1 // pred_check
      _
    $region79: #{_byol_forward_impl.1} parent=1 // pred_check_branch
      %78 = sbr.rel (0) target = $region81
    $region80: #{_byol_forward_impl.1} parent=1 // pred_region
      _
    $region81: #{_byol_forward_impl.1} parent=1 // pred_fallthru
      _
    // Predicated region
    $region82: #{_byol_forward_impl.1} parent=1 // pred_check
      _
    $region83: #{_byol_forward_impl.1} parent=1 // pred_check_branch
      %80 = sbr.rel (0) target = $region85
    $region84: #{_byol_forward_impl.1} parent=1 // pred_region
      _
    $region85: #{_byol_forward_impl.1} parent=1 // pred_fallthru
      _
    // Predicated region
    $region86: #{_byol_forward_impl.1} parent=1 // pred_check
      _
    $region87: #{_byol_forward_impl.1} parent=1 // pred_check_branch
      %82 = sbr.rel (0) target = $region89
    $region88: #{_byol_forward_impl.1} parent=1 // pred_region
      _
    $region89: #{_byol_forward_impl.1} parent=1 // pred_fallthru
      _
    // Predicated region
    $region90: #{_byol_forward_impl.1} parent=1 // pred_check
      _
    $region91: #{_byol_forward_impl.1} parent=1 // pred_check_branch
      %84 = sbr.rel (0) target = $region93
    $region92: #{_byol_forward_impl.1} parent=1 // pred_region
      _
    $region93: #{_byol_forward_impl.1} parent=1 // pred_fallthru
      _
    // Predicated region
    $region94: #{_byol_forward_impl.1} parent=1 // pred_check
      _
    $region95: #{_byol_forward_impl.1} parent=1 // pred_check_branch
      %86 = sbr.rel (0) target = $region97
    $region96: #{_byol_forward_impl.1} parent=1 // pred_region
      _
    $region97: #{_byol_forward_impl.1} parent=1 // pred_fallthru
      _
    // Predicated region
    $region98: #{_byol_forward_impl.1} parent=1 // pred_check
      _
    $region99: #{_byol_forward_impl.1} parent=1 // pred_check_branch
      %88 = sbr.rel (0) target = $region101
    $region100: #{_byol_forward_impl.1} parent=1 // pred_region
      %90 = dma.done [#allocation3], 16
    $region101: #{_byol_forward_impl.1} parent=1 // pred_fallthru
      _
    %91 = sfence
    %v93 = vld [vmem:[%s1] sm:$0xf]
    %v94 = vld [vmem:[%s1 + $0x4] sm:$0xf]
    %v95 = vld [vmem:[%s1 + $0x8] sm:$0xf]
    %v96 = vld [vmem:[%s1 + $0xc] sm:$0xf]
    %v97 = vld [vmem:[%s1 + $0x10] sm:$0xf]
    %v98 = vld [vmem:[%s1 + $0x14] sm:$0xf]
    %v99 = vld [vmem:[%s1 + $0x18] sm:$0xf]
    %v100 = vld [vmem:[%s1 + $0x1c] sm:$0xf]
    %v101 = vld [vmem:[%s1 + $0x20] sm:$0xf]
    %v102 = vld [vmem:[%s1 + $0x24] sm:$0xf]
    %v103 = vld [vmem:[%s1 + $0x28] sm:$0xf]
    %v104 = vld [vmem:[%s1 + $0x2c] sm:$0xf]
    %v105 = vld [vmem:[%s1 + $0x30] sm:$0xf]
    %v106 = vld [vmem:[%s1 + $0x34] sm:$0xf]
    %v107 = vld [vmem:[%s1 + $0x38] sm:$0xf]
    %v108 = vld [vmem:[%s1 + $0x3c] sm:$0xf]
    %v109 = vld [vmem:[%s1 + $0x40] sm:$0xf]
    %v110 = vld [vmem:[%s1 + $0x44] sm:$0xf]
    %v111 = vld [vmem:[%s1 + $0x48] sm:$0xf]
    %v112 = vld [vmem:[%s1 + $0x4c] sm:$0xf]
    %v113 = vld [vmem:[%s1 + $0x50] sm:$0xf]
    %v114 = vld [vmem:[%s1 + $0x54] sm:$0xf]
    %v115 = vld [vmem:[%s1 + $0x58] sm:$0xf]
    %v116 = vld [vmem:[%s1 + $0x5c] sm:$0xf]
    %v117 = vld [vmem:[%s1 + $0x60] sm:$0xf]
    %v118 = vld [vmem:[%s1 + $0x64] sm:$0xf]
    %v119 = vld [vmem:[%s1 + $0x68] sm:$0xf]
    %v120 = vld [vmem:[%s1 + $0x6c] sm:$0xf]
    %v121 = vld [vmem:[%s1 + $0x70] sm:$0xf]
    %v122 = vld [vmem:[%s1 + $0x74] sm:$0xf]
    %v123 = vld [vmem:[%s1 + $0x78] sm:$0xf]
    %v124 = vld [vmem:[%s1 + $0x7c] sm:$0xf]
    %v125 = vld [vmem:[%s1 + $0x80] sm:$0xf]
    %v126 = vld [vmem:[%s1 + $0x84] sm:$0xf]
    %v127 = vld [vmem:[%s1 + $0x88] sm:$0xf]
    %v128 = vld [vmem:[%s1 + $0x8c] sm:$0xf]
    %v129 = vld [vmem:[%s1 + $0x90] sm:$0xf]
    %v130 = vld [vmem:[%s1 + $0x94] sm:$0xf]
    %v131 = vld [vmem:[%s1 + $0x98] sm:$0xf]
    %v132 = vld [vmem:[%s1 + $0x9c] sm:$0xf]
    %v133 = vld [vmem:[%s1 + $0xa0] sm:$0xf]
    %v134 = vld [vmem:[%s1 + $0xa4] sm:$0xf]
    %v135 = vld [vmem:[%s1 + $0xa8] sm:$0xf]
    %v136 = vld [vmem:[%s1 + $0xac] sm:$0xf]
    %v137 = vld [vmem:[%s1 + $0xb0] sm:$0xf]
    %v138 = vld [vmem:[%s1 + $0xb4] sm:$0xf]
    %v139 = vld [vmem:[%s1 + $0xb8] sm:$0xf]
    %v140 = vld [vmem:[%s1 + $0xbc] sm:$0xf]
    %v141 = vld [vmem:[%s1 + $0xc0] sm:$0xf]
    %v142 = vld [vmem:[%s1 + $0xc4] sm:$0xf]
    %v143 = vld [vmem:[%s1 + $0xc8] sm:$0xf]
    %v144 = vld [vmem:[%s1 + $0xcc] sm:$0xf]
    %v145 = vld [vmem:[%s1 + $0xd0] sm:$0xf]
    %v146 = vld [vmem:[%s1 + $0xd4] sm:$0xf]
    %v147 = vld [vmem:[%s1 + $0xd8] sm:$0xf]
    %v148 = vld [vmem:[%s1 + $0xdc] sm:$0xf]
    %v149 = vld [vmem:[%s1 + $0xe0] sm:$0xf]
    %v150 = vld [vmem:[%s1 + $0xe4] sm:$0xf]
    %v151 = vld [vmem:[%s1 + $0xe8] sm:$0xf]
    %v152 = vld [vmem:[%s1 + $0xec] sm:$0xf]
    %v153 = vld [vmem:[%s1 + $0xf0] sm:$0xf]
    %v154 = vld [vmem:[%s1 + $0xf4] sm:$0xf]
    %v155 = vld [vmem:[%s1 + $0xf8] sm:$0xf]
    %v156 = vld [vmem:[%s1 + $0xfc] sm:$0xf]
    %v157 = vld [vmem:[%s1 + $0x100] sm:$0xf]
    %v158 = vld [vmem:[%s1 + $0x104] sm:$0xf]
    %v159 = vld [vmem:[%s1 + $0x108] sm:$0xf]
    %v160 = vld [vmem:[%s1 + $0x10c] sm:$0xf]
    %v161 = vld [vmem:[%s1 + $0x110] sm:$0xf]
    %v162 = vld [vmem:[%s1 + $0x114] sm:$0xf]
    %v163 = vld [vmem:[%s1 + $0x118] sm:$0xf]
    %v164 = vld [vmem:[%s1 + $0x11c] sm:$0xf]
    %v165 = vld [vmem:[%s1 + $0x120] sm:$0xf]
    %v166 = vld [vmem:[%s1 + $0x124] sm:$0xf]
    %v167 = vld [vmem:[%s1 + $0x128] sm:$0xf]
    %v168 = vld [vmem:[%s1 + $0x12c] sm:$0xf]
    %v169 = vld [vmem:[%s1 + $0x130] sm:$0xf]
    %v170 = vld [vmem:[%s1 + $0x134] sm:$0xf]
    %v171 = vld [vmem:[%s1 + $0x138] sm:$0xf]
    %v172 = vld [vmem:[%s1 + $0x13c] sm:$0xf]
    %v173 = vld [vmem:[%s1 + $0x140] sm:$0xf]
    %v174 = vld [vmem:[%s1 + $0x144] sm:$0xf]
    %v175 = vld [vmem:[%s1 + $0x148] sm:$0xf]
    %v176 = vld [vmem:[%s1 + $0x14c] sm:$0xf]
    %v177 = vld [vmem:[%s1 + $0x150] sm:$0xf]
    %v178 = vld [vmem:[%s1 + $0x154] sm:$0xf]
    %v179 = vld [vmem:[%s1 + $0x158] sm:$0xf]
    %v180 = vld [vmem:[%s1 + $0x15c] sm:$0xf]
    %v181 = vld [vmem:[%s1 + $0x160] sm:$0xf]
    %v182 = vld [vmem:[%s1 + $0x164] sm:$0xf]
    %v183 = vld [vmem:[%s1 + $0x168] sm:$0xf]
    %v184 = vld [vmem:[%s1 + $0x16c] sm:$0xf]
    %v185 = vld [vmem:[%s1 + $0x170] sm:$0xf]
    %v186 = vld [vmem:[%s1 + $0x174] sm:$0xf]
    %v187 = vld [vmem:[%s1 + $0x178] sm:$0xf]
    %v188 = vld [vmem:[%s1 + $0x17c] sm:$0xf]
    %v189 = vld [vmem:[%s1 + $0x180] sm:$0xf]
    %v190 = vld [vmem:[%s1 + $0x184] sm:$0xf]
    %v191 = vld [vmem:[%s1 + $0x188] sm:$0xf]
    %v192 = vld [vmem:[%s1 + $0x18c] sm:$0xf]
    %v193 = vld [vmem:[%s1 + $0x190] sm:$0xf]
    %v194 = vld [vmem:[%s1 + $0x194] sm:$0xf]
    %v195 = vld [vmem:[%s1 + $0x198] sm:$0xf]
    %v196 = vld [vmem:[%s1 + $0x19c] sm:$0xf]
    %v197 = vld [vmem:[%s1 + $0x1a0] sm:$0xf]
    %v198 = vld [vmem:[%s1 + $0x1a4] sm:$0xf]
    %v199 = vld [vmem:[%s1 + $0x1a8] sm:$0xf]
    %v200 = vld [vmem:[%s1 + $0x1ac] sm:$0xf]
    %v201 = vld [vmem:[%s1 + $0x1b0] sm:$0xf]
    %v202 = vld [vmem:[%s1 + $0x1b4] sm:$0xf]
    %v203 = vld [vmem:[%s1 + $0x1b8] sm:$0xf]
    %v204 = vld [vmem:[%s1 + $0x1bc] sm:$0xf]
    %v205 = vld [vmem:[%s1 + $0x1c0] sm:$0xf]
    %v206 = vld [vmem:[%s1 + $0x1c4] sm:$0xf]
    %v207 = vld [vmem:[%s1 + $0x1c8] sm:$0xf]
    %v208 = vld [vmem:[%s1 + $0x1cc] sm:$0xf]
    %v209 = vld [vmem:[%s1 + $0x1d0] sm:$0xf]
    %v210 = vld [vmem:[%s1 + $0x1d4] sm:$0xf]
    %v211 = vld [vmem:[%s1 + $0x1d8] sm:$0xf]
    %v212 = vld [vmem:[%s1 + $0x1dc] sm:$0xf]
    %v213 = vld [vmem:[%s1 + $0x1e0] sm:$0xf]
    %v214 = vld [vmem:[%s1 + $0x1e4] sm:$0xf]
    %v215 = vld [vmem:[%s1 + $0x1e8] sm:$0xf]
    %v216 = vld [vmem:[%s1 + $0x1ec] sm:$0xf]
    %v217 = vld [vmem:[%s1 + $0x1f0] sm:$0xf]
    %v218 = vld [vmem:[%s1 + $0x1f4] sm:$0xf]
    %v219 = vld [vmem:[%s1 + $0x1f8] sm:$0xf]
    %v220 = vld [vmem:[%s1 + $0x1fc] sm:$0xf]
    %v221 = vunpack.c.l.bf16 %v93
    %v222 = vunpack.c.l.bf16 %v94
    %v223 = vunpack.c.l.bf16 %v95
    %v224 = vunpack.c.l.bf16 %v96
    %v225 = vunpack.c.l.bf16 %v97
    %v226 = vunpack.c.l.bf16 %v98
    %v227 = vunpack.c.l.bf16 %v99
    %v228 = vunpack.c.l.bf16 %v100
    %v229 = vunpack.c.l.bf16 %v101
    %v230 = vunpack.c.l.bf16 %v102
    %v231 = vunpack.c.l.bf16 %v103
    %v232 = vunpack.c.l.bf16 %v104
    %v233 = vunpack.c.l.bf16 %v105
    %v234 = vunpack.c.l.bf16 %v106
    %v235 = vunpack.c.l.bf16 %v107
    %v236 = vunpack.c.l.bf16 %v108
    %v237 = vunpack.c.l.bf16 %v109
    %v238 = vunpack.c.l.bf16 %v110
    %v239 = vunpack.c.l.bf16 %v111
    %v240 = vunpack.c.l.bf16 %v112
    %v241 = vunpack.c.l.bf16 %v113
    %v242 = vunpack.c.l.bf16 %v114
    %v243 = vunpack.c.l.bf16 %v115
    %v244 = vunpack.c.l.bf16 %v116
    %v245 = vunpack.c.l.bf16 %v117
    %v246 = vunpack.c.l.bf16 %v118
    %v247 = vunpack.c.l.bf16 %v119
    %v248 = vunpack.c.l.bf16 %v120
    %v249 = vunpack.c.l.bf16 %v121
    %v250 = vunpack.c.l.bf16 %v122
    %v251 = vunpack.c.l.bf16 %v123
    %v252 = vunpack.c.l.bf16 %v124
    %v253 = vunpack.c.l.bf16 %v125
    %v254 = vunpack.c.l.bf16 %v126
    %v255 = vunpack.c.l.bf16 %v127
    %v256 = vunpack.c.l.bf16 %v128
    %v257 = vunpack.c.l.bf16 %v129
    %v258 = vunpack.c.l.bf16 %v130
    %v259 = vunpack.c.l.bf16 %v131
    %v260 = vunpack.c.l.bf16 %v132
    %v261 = vunpack.c.l.bf16 %v133
    %v262 = vunpack.c.l.bf16 %v134
    %v263 = vunpack.c.l.bf16 %v135
    %v264 = vunpack.c.l.bf16 %v136
    %v265 = vunpack.c.l.bf16 %v137
    %v266 = vunpack.c.l.bf16 %v138
    %v267 = vunpack.c.l.bf16 %v139
    %v268 = vunpack.c.l.bf16 %v140
    %v269 = vunpack.c.l.bf16 %v141
    %v270 = vunpack.c.l.bf16 %v142
    %v271 = vunpack.c.l.bf16 %v143
    %v272 = vunpack.c.l.bf16 %v144
    %v273 = vunpack.c.l.bf16 %v145
    %v274 = vunpack.c.l.bf16 %v146
    %v275 = vunpack.c.l.bf16 %v147
    %v276 = vunpack.c.l.bf16 %v148
    %v277 = vunpack.c.l.bf16 %v149
    %v278 = vunpack.c.l.bf16 %v150
    %v279 = vunpack.c.l.bf16 %v151
    %v280 = vunpack.c.l.bf16 %v152
    %v281 = vunpack.c.l.bf16 %v153
    %v282 = vunpack.c.l.bf16 %v154
    %v283 = vunpack.c.l.bf16 %v155
    %v284 = vunpack.c.l.bf16 %v156
    %v285 = vunpack.c.l.bf16 %v157
    %v286 = vunpack.c.l.bf16 %v158
    %v287 = vunpack.c.l.bf16 %v159
    %v288 = vunpack.c.l.bf16 %v160
    %v289 = vunpack.c.l.bf16 %v161
    %v290 = vunpack.c.l.bf16 %v162
    %v291 = vunpack.c.l.bf16 %v163
    %v292 = vunpack.c.l.bf16 %v164
    %v293 = vunpack.c.l.bf16 %v165
    %v294 = vunpack.c.l.bf16 %v166
    %v295 = vunpack.c.l.bf16 %v167
    %v296 = vunpack.c.l.bf16 %v168
    %v297 = vunpack.c.l.bf16 %v169
    %v298 = vunpack.c.l.bf16 %v170
    %v299 = vunpack.c.l.bf16 %v171
    %v300 = vunpack.c.l.bf16 %v172
    %v301 = vunpack.c.l.bf16 %v173
    %v302 = vunpack.c.l.bf16 %v174
    %v303 = vunpack.c.l.bf16 %v175
    %v304 = vunpack.c.l.bf16 %v176
    %v305 = vunpack.c.l.bf16 %v177
    %v306 = vunpack.c.l.bf16 %v178
    %v307 = vunpack.c.l.bf16 %v179
    %v308 = vunpack.c.l.bf16 %v180
    %v309 = vunpack.c.l.bf16 %v181
    %v310 = vunpack.c.l.bf16 %v182
    %v311 = vunpack.c.l.bf16 %v183
    %v312 = vunpack.c.l.bf16 %v184
    %v313 = vunpack.c.l.bf16 %v185
    %v314 = vunpack.c.l.bf16 %v186
    %v315 = vunpack.c.l.bf16 %v187
    %v316 = vunpack.c.l.bf16 %v188
    %v317 = vunpack.c.l.bf16 %v189
    %v318 = vunpack.c.l.bf16 %v190
    %v319 = vunpack.c.l.bf16 %v191
    %v320 = vunpack.c.l.bf16 %v192
    %v321 = vunpack.c.l.bf16 %v193
    %v322 = vunpack.c.l.bf16 %v194
    %v323 = vunpack.c.l.bf16 %v195
    %v324 = vunpack.c.l.bf16 %v196
    %v325 = vunpack.c.l.bf16 %v197
    %v326 = vunpack.c.l.bf16 %v198
    %v327 = vunpack.c.l.bf16 %v199
    %v328 = vunpack.c.l.bf16 %v200
    %v329 = vunpack.c.l.bf16 %v201
    %v330 = vunpack.c.l.bf16 %v202
    %v331 = vunpack.c.l.bf16 %v203
    %v332 = vunpack.c.l.bf16 %v204
    %v333 = vunpack.c.l.bf16 %v205
    %v334 = vunpack.c.l.bf16 %v206
    %v335 = vunpack.c.l.bf16 %v207
    %v336 = vunpack.c.l.bf16 %v208
    %v337 = vunpack.c.l.bf16 %v209
    %v338 = vunpack.c.l.bf16 %v210
    %v339 = vunpack.c.l.bf16 %v211
    %v340 = vunpack.c.l.bf16 %v212
    %v341 = vunpack.c.l.bf16 %v213
    %v342 = vunpack.c.l.bf16 %v214
    %v343 = vunpack.c.l.bf16 %v215
    %v344 = vunpack.c.l.bf16 %v216
    %v345 = vunpack.c.l.bf16 %v217
    %v346 = vunpack.c.l.bf16 %v218
    %v347 = vunpack.c.l.bf16 %v219
    %v348 = vunpack.c.l.bf16 %v220
    %vm349 = vcmask 31744
    %v350 = vsel %vm349, %v221, 0.0
    %v351 = vsel %vm349, %v222, 0.0
    %v352 = vadd.f32 %v350, %v351
    %v353 = vsel %vm349, %v223, 0.0
    %v354 = vadd.f32 %v352, %v353
    %v355 = vsel %vm349, %v224, 0.0
    %v356 = vadd.f32 %v354, %v355
    %v357 = vsel %vm349, %v225, 0.0
    %v358 = vadd.f32 %v356, %v357
    %v359 = vsel %vm349, %v226, 0.0
    %v360 = vadd.f32 %v358, %v359
    %v361 = vsel %vm349, %v227, 0.0
    %v362 = vadd.f32 %v360, %v361
    %v363 = vsel %vm349, %v228, 0.0
    %v364 = vadd.f32 %v362, %v363
    %v365 = vrot.slane %v364, 4
    %v366 = vadd.f32 %v364, %v365
    %v367 = vrot.slane %v366, 2
    %v368 = vadd.f32 %v366, %v367
    %v369 = vrot.slane %v368, 1
    %v370 = vadd.f32 %v368, %v369
    %v371 = vsel %vm349, %v229, 0.0
    %v372 = vsel %vm349, %v230, 0.0
    %v373 = vadd.f32 %v371, %v372
    %v374 = vsel %vm349, %v231, 0.0
    %v375 = vadd.f32 %v373, %v374
    %v376 = vsel %vm349, %v232, 0.0
    %v377 = vadd.f32 %v375, %v376
    %v378 = vsel %vm349, %v233, 0.0
    %v379 = vadd.f32 %v377, %v378
    %v380 = vsel %vm349, %v234, 0.0
    %v381 = vadd.f32 %v379, %v380
    %v382 = vsel %vm349, %v235, 0.0
    %v383 = vadd.f32 %v381, %v382
    %v384 = vsel %vm349, %v236, 0.0
    %v385 = vadd.f32 %v383, %v384
    %v386 = vrot.slane %v385, 4
    %v387 = vadd.f32 %v385, %v386
    %v388 = vrot.slane %v387, 2
    %v389 = vadd.f32 %v387, %v388
    %v390 = vrot.slane %v389, 1
    %v391 = vadd.f32 %v389, %v390
    %v392 = vsel %vm349, %v237, 0.0
    %v393 = vsel %vm349, %v238, 0.0
    %v394 = vadd.f32 %v392, %v393
    %v395 = vsel %vm349, %v239, 0.0
    %v396 = vadd.f32 %v394, %v395
    %v397 = vsel %vm349, %v240, 0.0
    %v398 = vadd.f32 %v396, %v397
    %v399 = vsel %vm349, %v241, 0.0
    %v400 = vadd.f32 %v398, %v399
    %v401 = vsel %vm349, %v242, 0.0
    %v402 = vadd.f32 %v400, %v401
    %v403 = vsel %vm349, %v243, 0.0
    %v404 = vadd.f32 %v402, %v403
    %v405 = vsel %vm349, %v244, 0.0
    %v406 = vadd.f32 %v404, %v405
    %v407 = vrot.slane %v406, 4
    %v408 = vadd.f32 %v406, %v407
    %v409 = vrot.slane %v408, 2
    %v410 = vadd.f32 %v408, %v409
    %v411 = vrot.slane %v410, 1
    %v412 = vadd.f32 %v410, %v411
    %v413 = vsel %vm349, %v245, 0.0
    %v414 = vsel %vm349, %v246, 0.0
    %v415 = vadd.f32 %v413, %v414
    %v416 = vsel %vm349, %v247, 0.0
    %v417 = vadd.f32 %v415, %v416
    %v418 = vsel %vm349, %v248, 0.0
    %v419 = vadd.f32 %v417, %v418
    %v420 = vsel %vm349, %v249, 0.0
    %v421 = vadd.f32 %v419, %v420
    %v422 = vsel %vm349, %v250, 0.0
    %v423 = vadd.f32 %v421, %v422
    %v424 = vsel %vm349, %v251, 0.0
    %v425 = vadd.f32 %v423, %v424
    %v426 = vsel %vm349, %v252, 0.0
    %v427 = vadd.f32 %v425, %v426
    %v428 = vrot.slane %v427, 4
    %v429 = vadd.f32 %v427, %v428
    %v430 = vrot.slane %v429, 2
    %v431 = vadd.f32 %v429, %v430
    %v432 = vrot.slane %v431, 1
    %v433 = vadd.f32 %v431, %v432
    %v434 = vsel %vm349, %v253, 0.0
    %v435 = vsel %vm349, %v254, 0.0
    %v436 = vadd.f32 %v434, %v435
    %v437 = vsel %vm349, %v255, 0.0
    %v438 = vadd.f32 %v436, %v437
    %v439 = vsel %vm349, %v256, 0.0
    %v440 = vadd.f32 %v438, %v439
    %v441 = vsel %vm349, %v257, 0.0
    %v442 = vadd.f32 %v440, %v441
    %v443 = vsel %vm349, %v258, 0.0
    %v444 = vadd.f32 %v442, %v443
    %v445 = vsel %vm349, %v259, 0.0
    %v446 = vadd.f32 %v444, %v445
    %v447 = vsel %vm349, %v260, 0.0
    %v448 = vadd.f32 %v446, %v447
    %v449 = vrot.slane %v448, 4
    %v450 = vadd.f32 %v448, %v449
    %v451 = vrot.slane %v450, 2
    %v452 = vadd.f32 %v450, %v451
    %v453 = vrot.slane %v452, 1
    %v454 = vadd.f32 %v452, %v453
    %v455 = vsel %vm349, %v261, 0.0
    %v456 = vsel %vm349, %v262, 0.0
    %v457 = vadd.f32 %v455, %v456
    %v458 = vsel %vm349, %v263, 0.0
    %v459 = vadd.f32 %v457, %v458
    %v460 = vsel %vm349, %v264, 0.0
    %v461 = vadd.f32 %v459, %v460
    %v462 = vsel %vm349, %v265, 0.0
    %v463 = vadd.f32 %v461, %v462
    %v464 = vsel %vm349, %v266, 0.0
    %v465 = vadd.f32 %v463, %v464
    %v466 = vsel %vm349, %v267, 0.0
    %v467 = vadd.f32 %v465, %v466
    %v468 = vsel %vm349, %v268, 0.0
    %v469 = vadd.f32 %v467, %v468
    %v470 = vrot.slane %v469, 4
    %v471 = vadd.f32 %v469, %v470
    %v472 = vrot.slane %v471, 2
    %v473 = vadd.f32 %v471, %v472
    %v474 = vrot.slane %v473, 1
    %v475 = vadd.f32 %v473, %v474
    %v476 = vsel %vm349, %v269, 0.0
    %v477 = vsel %vm349, %v270, 0.0
    %v478 = vadd.f32 %v476, %v477
    %v479 = vsel %vm349, %v271, 0.0
    %v480 = vadd.f32 %v478, %v479
    %v481 = vsel %vm349, %v272, 0.0
    %v482 = vadd.f32 %v480, %v481
    %v483 = vsel %vm349, %v273, 0.0
    %v484 = vadd.f32 %v482, %v483
    %v485 = vsel %vm349, %v274, 0.0
    %v486 = vadd.f32 %v484, %v485
    %v487 = vsel %vm349, %v275, 0.0
    %v488 = vadd.f32 %v486, %v487
    %v489 = vsel %vm349, %v276, 0.0
    %v490 = vadd.f32 %v488, %v489
    %v491 = vrot.slane %v490, 4
    %v492 = vadd.f32 %v490, %v491
    %v493 = vrot.slane %v492, 2
    %v494 = vadd.f32 %v492, %v493
    %v495 = vrot.slane %v494, 1
    %v496 = vadd.f32 %v494, %v495
    %v497 = vsel %vm349, %v277, 0.0
    %v498 = vsel %vm349, %v278, 0.0
    %v499 = vadd.f32 %v497, %v498
    %v500 = vsel %vm349, %v279, 0.0
    %v501 = vadd.f32 %v499, %v500
    %v502 = vsel %vm349, %v280, 0.0
    %v503 = vadd.f32 %v501, %v502
    %v504 = vsel %vm349, %v281, 0.0
    %v505 = vadd.f32 %v503, %v504
    %v506 = vsel %vm349, %v282, 0.0
    %v507 = vadd.f32 %v505, %v506
    %v508 = vsel %vm349, %v283, 0.0
    %v509 = vadd.f32 %v507, %v508
    %v510 = vsel %vm349, %v284, 0.0
    %v511 = vadd.f32 %v509, %v510
    %v512 = vrot.slane %v511, 4
    %v513 = vadd.f32 %v511, %v512
    %v514 = vrot.slane %v513, 2
    %v515 = vadd.f32 %v513, %v514
    %v516 = vrot.slane %v515, 1
    %v517 = vadd.f32 %v515, %v516
    %v518 = vsel %vm349, %v285, 0.0
    %v519 = vsel %vm349, %v286, 0.0
    %v520 = vadd.f32 %v518, %v519
    %v521 = vsel %vm349, %v287, 0.0
    %v522 = vadd.f32 %v520, %v521
    %v523 = vsel %vm349, %v288, 0.0
    %v524 = vadd.f32 %v522, %v523
    %v525 = vsel %vm349, %v289, 0.0
    %v526 = vadd.f32 %v524, %v525
    %v527 = vsel %vm349, %v290, 0.0
    %v528 = vadd.f32 %v526, %v527
    %v529 = vsel %vm349, %v291, 0.0
    %v530 = vadd.f32 %v528, %v529
    %v531 = vsel %vm349, %v292, 0.0
    %v532 = vadd.f32 %v530, %v531
    %v533 = vrot.slane %v532, 4
    %v534 = vadd.f32 %v532, %v533
    %v535 = vrot.slane %v534, 2
    %v536 = vadd.f32 %v534, %v535
    %v537 = vrot.slane %v536, 1
    %v538 = vadd.f32 %v536, %v537
    %v539 = vsel %vm349, %v293, 0.0
    %v540 = vsel %vm349, %v294, 0.0
    %v541 = vadd.f32 %v539, %v540
    %v542 = vsel %vm349, %v295, 0.0
    %v543 = vadd.f32 %v541, %v542
    %v544 = vsel %vm349, %v296, 0.0
    %v545 = vadd.f32 %v543, %v544
    %v546 = vsel %vm349, %v297, 0.0
    %v547 = vadd.f32 %v545, %v546
    %v548 = vsel %vm349, %v298, 0.0
    %v549 = vadd.f32 %v547, %v548
    %v550 = vsel %vm349, %v299, 0.0
    %v551 = vadd.f32 %v549, %v550
    %v552 = vsel %vm349, %v300, 0.0
    %v553 = vadd.f32 %v551, %v552
    %v554 = vrot.slane %v553, 4
    %v555 = vadd.f32 %v553, %v554
    %v556 = vrot.slane %v555, 2
    %v557 = vadd.f32 %v555, %v556
    %v558 = vrot.slane %v557, 1
    %v559 = vadd.f32 %v557, %v558
    %v560 = vsel %vm349, %v301, 0.0
    %v561 = vsel %vm349, %v302, 0.0
    %v562 = vadd.f32 %v560, %v561
    %v563 = vsel %vm349, %v303, 0.0
    %v564 = vadd.f32 %v562, %v563
    %v565 = vsel %vm349, %v304, 0.0
    %v566 = vadd.f32 %v564, %v565
    %v567 = vsel %vm349, %v305, 0.0
    %v568 = vadd.f32 %v566, %v567
    %v569 = vsel %vm349, %v306, 0.0
    %v570 = vadd.f32 %v568, %v569
    %v571 = vsel %vm349, %v307, 0.0
    %v572 = vadd.f32 %v570, %v571
    %v573 = vsel %vm349, %v308, 0.0
    %v574 = vadd.f32 %v572, %v573
    %v575 = vrot.slane %v574, 4
    %v576 = vadd.f32 %v574, %v575
    %v577 = vrot.slane %v576, 2
    %v578 = vadd.f32 %v576, %v577
    %v579 = vrot.slane %v578, 1
    %v580 = vadd.f32 %v578, %v579
    %v581 = vsel %vm349, %v309, 0.0
    %v582 = vsel %vm349, %v310, 0.0
    %v583 = vadd.f32 %v581, %v582
    %v584 = vsel %vm349, %v311, 0.0
    %v585 = vadd.f32 %v583, %v584
    %v586 = vsel %vm349, %v312, 0.0
    %v587 = vadd.f32 %v585, %v586
    %v588 = vsel %vm349, %v313, 0.0
    %v589 = vadd.f32 %v587, %v588
    %v590 = vsel %vm349, %v314, 0.0
    %v591 = vadd.f32 %v589, %v590
    %v592 = vsel %vm349, %v315, 0.0
    %v593 = vadd.f32 %v591, %v592
    %v594 = vsel %vm349, %v316, 0.0
    %v595 = vadd.f32 %v593, %v594
    %v596 = vrot.slane %v595, 4
    %v597 = vadd.f32 %v595, %v596
    %v598 = vrot.slane %v597, 2
    %v599 = vadd.f32 %v597, %v598
    %v600 = vrot.slane %v599, 1
    %v601 = vadd.f32 %v599, %v600
    %v602 = vsel %vm349, %v317, 0.0
    %v603 = vsel %vm349, %v318, 0.0
    %v604 = vadd.f32 %v602, %v603
    %v605 = vsel %vm349, %v319, 0.0
    %v606 = vadd.f32 %v604, %v605
    %v607 = vsel %vm349, %v320, 0.0
    %v608 = vadd.f32 %v606, %v607
    %v609 = vsel %vm349, %v321, 0.0
    %v610 = vadd.f32 %v608, %v609
    %v611 = vsel %vm349, %v322, 0.0
    %v612 = vadd.f32 %v610, %v611
    %v613 = vsel %vm349, %v323, 0.0
    %v614 = vadd.f32 %v612, %v613
    %v615 = vsel %vm349, %v324, 0.0
    %v616 = vadd.f32 %v614, %v615
    %v617 = vrot.slane %v616, 4
    %v618 = vadd.f32 %v616, %v617
    %v619 = vrot.slane %v618, 2
    %v620 = vadd.f32 %v618, %v619
    %v621 = vrot.slane %v620, 1
    %v622 = vadd.f32 %v620, %v621
    %v623 = vsel %vm349, %v325, 0.0
    %v624 = vsel %vm349, %v326, 0.0
    %v625 = vadd.f32 %v623, %v624
    %v626 = vsel %vm349, %v327, 0.0
    %v627 = vadd.f32 %v625, %v626
    %v628 = vsel %vm349, %v328, 0.0
    %v629 = vadd.f32 %v627, %v628
    %v630 = vsel %vm349, %v329, 0.0
    %v631 = vadd.f32 %v629, %v630
    %v632 = vsel %vm349, %v330, 0.0
    %v633 = vadd.f32 %v631, %v632
    %v634 = vsel %vm349, %v331, 0.0
    %v635 = vadd.f32 %v633, %v634
    %v636 = vsel %vm349, %v332, 0.0
    %v637 = vadd.f32 %v635, %v636
    %v638 = vrot.slane %v637, 4
    %v639 = vadd.f32 %v637, %v638
    %v640 = vrot.slane %v639, 2
    %v641 = vadd.f32 %v639, %v640
    %v642 = vrot.slane %v641, 1
    %v643 = vadd.f32 %v641, %v642
    %v644 = vsel %vm349, %v333, 0.0
    %v645 = vsel %vm349, %v334, 0.0
    %v646 = vadd.f32 %v644, %v645
    %v647 = vsel %vm349, %v335, 0.0
    %v648 = vadd.f32 %v646, %v647
    %v649 = vsel %vm349, %v336, 0.0
    %v650 = vadd.f32 %v648, %v649
    %v651 = vsel %vm349, %v337, 0.0
    %v652 = vadd.f32 %v650, %v651
    %v653 = vsel %vm349, %v338, 0.0
    %v654 = vadd.f32 %v652, %v653
    %v655 = vsel %vm349, %v339, 0.0
    %v656 = vadd.f32 %v654, %v655
    %v657 = vsel %vm349, %v340, 0.0
    %v658 = vadd.f32 %v656, %v657
    %v659 = vrot.slane %v658, 4
    %v660 = vadd.f32 %v658, %v659
    %v661 = vrot.slane %v660, 2
    %v662 = vadd.f32 %v660, %v661
    %v663 = vrot.slane %v662, 1
    %v664 = vadd.f32 %v662, %v663
    %v665 = vsel %vm349, %v341, 0.0
    %v666 = vsel %vm349, %v342, 0.0
    %v667 = vadd.f32 %v665, %v666
    %v668 = vsel %vm349, %v343, 0.0
    %v669 = vadd.f32 %v667, %v668
    %v670 = vsel %vm349, %v344, 0.0
    %v671 = vadd.f32 %v669, %v670
    %v672 = vsel %vm349, %v345, 0.0
    %v673 = vadd.f32 %v671, %v672
    %v674 = vsel %vm349, %v346, 0.0
    %v675 = vadd.f32 %v673, %v674
    %v676 = vsel %vm349, %v347, 0.0
    %v677 = vadd.f32 %v675, %v676
    %v678 = vsel %vm349, %v348, 0.0
    %v679 = vadd.f32 %v677, %v678
    %v680 = vrot.slane %v679, 4
    %v681 = vadd.f32 %v679, %v680
    %v682 = vrot.slane %v681, 2
    %v683 = vadd.f32 %v681, %v682
    %v684 = vrot.slane %v683, 1
    %v685 = vadd.f32 %v683, %v684
    %v686 = vpack.c.bf16 %v370, %v370
    %v687 = vpack.c.bf16 %v391, %v391
    %v688 = vpack.c.bf16 %v412, %v412
    %v689 = vpack.c.bf16 %v433, %v433
    %v690 = vpack.c.bf16 %v454, %v454
    %v691 = vpack.c.bf16 %v475, %v475
    %v692 = vpack.c.bf16 %v496, %v496
    %v693 = vpack.c.bf16 %v517, %v517
    %v694 = vpack.c.bf16 %v538, %v538
    %v695 = vpack.c.bf16 %v559, %v559
    %v696 = vpack.c.bf16 %v580, %v580
    %v697 = vpack.c.bf16 %v601, %v601
    %v698 = vpack.c.bf16 %v622, %v622
    %v699 = vpack.c.bf16 %v643, %v643
    %v700 = vpack.c.bf16 %v664, %v664
    %v701 = vpack.c.bf16 %v685, %v685
    %v702 = vld [vmem:[%s2] sm:$0x3]
    %v703 = vld [vmem:[%s3] sm:$0x1]
    %v705 = vperm.slane %v703, 0
    %v723 = vunpack.c.l.b16 %v686
    %v724 = vunpack.c.l.b16 %v687
    %v725 = vunpack.c.l.b16 %v688
    %v726 = vunpack.c.l.b16 %v689
    %v727 = vunpack.c.l.b16 %v690
    %v728 = vunpack.c.l.b16 %v691
    %v729 = vunpack.c.l.b16 %v692
    %v730 = vunpack.c.l.b16 %v693
    %v731 = vunpack.c.l.b16 %v694
    %v732 = vunpack.c.l.b16 %v695
    %v733 = vunpack.c.l.b16 %v696
    %v734 = vunpack.c.l.b16 %v697
    %v735 = vunpack.c.l.b16 %v698
    %v736 = vunpack.c.l.b16 %v699
    %v737 = vunpack.c.l.b16 %v700
    %v738 = vunpack.c.l.b16 %v701
    %vm739 = vcmask 1041409
    %v740 = vsel %vm739, %v724, %v723
    %vm741 = vcmask 1042434
    %v742 = vsel %vm741, %v725, %v740
    %vm743 = vcmask 1043459
    %v744 = vsel %vm743, %v726, %v742
    %vm745 = vcmask 1044484
    %v746 = vsel %vm745, %v727, %v744
    %vm747 = vcmask 1045509
    %v748 = vsel %vm747, %v728, %v746
    %vm749 = vcmask 1046534
    %v750 = vsel %vm749, %v729, %v748
    %vm751 = vcmask 1047559
    %v752 = vsel %vm751, %v730, %v750
    %v753 = vsel %vm739, %v732, %v731
    %v754 = vsel %vm741, %v733, %v753
    %v755 = vsel %vm743, %v734, %v754
    %v756 = vsel %vm745, %v735, %v755
    %v757 = vsel %vm747, %v736, %v756
    %v758 = vsel %vm749, %v737, %v757
    %v759 = vsel %vm751, %v738, %v758
    %v760 = vpack.c.b16 %v759, %v752
    %v762 = vsel %vm349, %v760, 0
    %vm764 = vcmask 1041408
    %v766 = vsel %vm764, %v702, 0
    %768 = vmatpush.bf16.msra.mxu0 0
    %769 = vmatpush.bf16.msra.mxu0 0
    %770 = vmatpush.bf16.msra.mxu0 0
    %771 = vmatpush.bf16.msra.mxu0 0
    %772 = vmatpush.bf16.msra.mxu0 0
    %773 = vmatpush.bf16.msra.mxu0 0
    %774 = vmatpush.bf16.msra.mxu0 0
    %775 = vmatpush.bf16.msra.mxu0 %v766
    %776 = vmatmul.bf16.gmra.mxu0 %v762
    %v777 = vpop.f32.mrf.mxu0
    %v778 = vadd.f32 %v705, %v777
    %v779 = vpop.f32.mrf.mxu0
    %v780 = vadd.f32 %v705, %v779
    %781 = vdwg.mxu0
    %v782 = vld [vmem:[%s4] sm:$0xf]
    %v783 = vld [vmem:[%s4 + $0x4] sm:$0xf]
    %v784 = vld [vmem:[%s4 + $0x8] sm:$0xf]
    %v785 = vld [vmem:[%s4 + $0xc] sm:$0xf]
    %v786 = vld [vmem:[%s5] sm:$0x1]
    %v787 = vld [vmem:[%s6] sm:$0x1]
    %v788 = vld [vmem:[%s7] sm:$0x1]
    %v789 = vld [vmem:[%s8] sm:$0xf]
    %v790 = vld [vmem:[%s8 + $0x4] sm:$0xf]
    %v791 = vld [vmem:[%s8 + $0x8] sm:$0xf]
    %v792 = vld [vmem:[%s8 + $0xc] sm:$0xf]
    %v793 = vld [vmem:[%s8 + $0x10] sm:$0xf]
    %v794 = vld [vmem:[%s8 + $0x14] sm:$0xf]
    %v795 = vld [vmem:[%s8 + $0x18] sm:$0xf]
    %v796 = vld [vmem:[%s8 + $0x1c] sm:$0xf]
    %v797 = vld [vmem:[%s9] sm:$0x1]
    %v798 = vpack.c.bf16 %v780, %v778
    %v800 = vperm.slane %v786, 0
    %v806 = vunpack.c.l.b16 %v782
    %v807 = vunpack.c.l.b16 %v783
    %v808 = vunpack.c.l.b16 %v784
    %v809 = vunpack.c.l.b16 %v785
    %v810 = vpack.c.b16 %v807, %v806
    %v811 = vpack.c.b16 %v809, %v808
    %vm814 = vcmask 261120
    %v816 = vsel %vm814, %v798, 0
    %818 = vmatpush.bf16.msra.mxu0 0
    %819 = vmatpush.bf16.msra.mxu0 0
    %820 = vmatpush.bf16.msra.mxu0 0
    %821 = vmatpush.bf16.msra.mxu0 0
    %822 = vmatpush.bf16.msra.mxu0 0
    %823 = vmatpush.bf16.msra.mxu0 0
    %824 = vmatpush.bf16.msra.mxu0 %v811
    %825 = vmatpush.bf16.msra.mxu0 %v810
    %826 = vmatmul.bf16.gmra.mxu0 %v816
    %v827 = vpop.f32.mrf.mxu0
    %v828 = vadd.f32 %v800, %v827
    %v829 = vpop.f32.mrf.mxu0
    %v830 = vadd.f32 %v800, %v829
    %831 = vdwg.mxu0
    %vm832 = vcmask 523264
    %v833 = vsel %vm832, %v828, 0.0
    %v834 = vrot.slane %v833, 4
    %v835 = vadd.f32 %v833, %v834
    %v836 = vrot.slane %v835, 2
    %v837 = vadd.f32 %v835, %v836
    %v838 = vrot.slane %v837, 1
    %v839 = vadd.f32 %v837, %v838
    %v840 = vrcp.pop 8.0
    %v841 = vmul.f32 8.0, %v840
    %v842 = vsub.f32 1.0, %v841
    %v843 = vmul.f32 %v840, %v842
    %v844 = vadd.f32 %v840, %v843
    %vm845 = vweird.f32 %v840
    %v846 = vsel %vm845, %v840, %v844
    %v847 = vmul.f32 %v839, %v846
    %v848 = vsub.f32 %v828, %v847
    %v849 = vmul.f32 %v848, %v848
    %v850 = vsel %vm832, %v849, 0.0
    %v851 = vrot.slane %v850, 4
    %v852 = vadd.f32 %v850, %v851
    %v853 = vrot.slane %v852, 2
    %v854 = vadd.f32 %v852, %v853
    %v855 = vrot.slane %v854, 1
    %v856 = vadd.f32 %v854, %v855
    %v857 = vmul.f32 %v856, %v846
    %v858 = vadd.f32 %v857, 1e-05
    %v859 = vrsqrt.pop %v858
    %v860 = vmul.f32 %v859, %v858
    %v861 = vmul.f32 %v860, %v859
    %v862 = vmul.f32 0.5, %v861
    %v863 = vsub.f32 1.5, %v862
    %v864 = vmul.f32 %v859, %v863
    %vm865 = vweird.f32 %v858
    %vm866 = vweird.f32 %v859
    %vm867 = vmor %vm865, %vm866
    %v868 = vsel %vm867, %v859, %v864
    %v869 = vmul.f32 %v848, %v868
    %v870 = vsel %vm832, %v830, 0.0
    %v871 = vrot.slane %v870, 4
    %v872 = vadd.f32 %v870, %v871
    %v873 = vrot.slane %v872, 2
    %v874 = vadd.f32 %v872, %v873
    %v875 = vrot.slane %v874, 1
    %v876 = vadd.f32 %v874, %v875
    %v877 = vmul.f32 %v876, %v846
    %v878 = vsub.f32 %v830, %v877
    %v879 = vmul.f32 %v878, %v878
    %v880 = vsel %vm832, %v879, 0.0
    %v881 = vrot.slane %v880, 4
    %v882 = vadd.f32 %v880, %v881
    %v883 = vrot.slane %v882, 2
    %v884 = vadd.f32 %v882, %v883
    %v885 = vrot.slane %v884, 1
    %v886 = vadd.f32 %v884, %v885
    %v887 = vmul.f32 %v886, %v846
    %v888 = vadd.f32 %v887, 1e-05
    %v889 = vrsqrt.pop %v888
    %v890 = vmul.f32 %v889, %v888
    %v891 = vmul.f32 %v890, %v889
    %v892 = vmul.f32 0.5, %v891
    %v893 = vsub.f32 1.5, %v892
    %v894 = vmul.f32 %v889, %v893
    %vm895 = vweird.f32 %v888
    %vm896 = vweird.f32 %v889
    %vm897 = vmor %vm895, %vm896
    %v898 = vsel %vm897, %v889, %v894
    %v899 = vmul.f32 %v878, %v898
    %v901 = vperm.slane %v787, 0
    %v903 = vmul.f32 %v869, %v901
    %v904 = vmul.f32 %v899, %v901
    %v906 = vperm.slane %v788, 0
    %v908 = vadd.f32 %v903, %v906
    %v909 = vadd.f32 %v904, %v906
    %v910 = vmax.f32 %v908, 0.0
    %v911 = vmax.f32 %v909, 0.0
    %v912 = vpack.c.bf16 %v911, %v910
    %v914 = vperm.slane %v797, 0
    %v924 = vunpack.c.l.b16 %v789
    %v925 = vunpack.c.l.b16 %v790
    %v926 = vunpack.c.l.b16 %v791
    %v927 = vunpack.c.l.b16 %v792
    %v928 = vunpack.c.l.b16 %v793
    %v929 = vunpack.c.l.b16 %v794
    %v930 = vunpack.c.l.b16 %v795
    %v931 = vunpack.c.l.b16 %v796
    %v932 = vpack.c.b16 %v925, %v924
    %v933 = vpack.c.b16 %v927, %v926
    %v934 = vpack.c.b16 %v929, %v928
    %v935 = vpack.c.b16 %v931, %v930
    %v941 = vsel %vm832, %v912, 0
    %943 = vmatpush.bf16.msra.mxu0 0
    %944 = vmatpush.bf16.msra.mxu0 0
    %945 = vmatpush.bf16.msra.mxu0 0
    %946 = vmatpush.bf16.msra.mxu0 0
    %947 = vmatpush.bf16.msra.mxu0 %v935
    %948 = vmatpush.bf16.msra.mxu0 %v934
    %949 = vmatpush.bf16.msra.mxu0 %v933
    %950 = vmatpush.bf16.msra.mxu0 %v932
    %951 = vmatmul.bf16.gmra.mxu0 %v941
    %v952 = vpop.f32.mrf.mxu0
    %v953 = vadd.f32 %v914, %v952
    %v954 = vpop.f32.mrf.mxu0
    %v955 = vadd.f32 %v914, %v954
    %956 = vdwg.mxu0
    %v957 = vld [vmem:[%s10] sm:$0xf]
    %v958 = vld [vmem:[%s10 + $0x4] sm:$0xf]
    %v959 = vld [vmem:[%s10 + $0x8] sm:$0xf]
    %v960 = vld [vmem:[%s10 + $0xc] sm:$0xf]
    %v961 = vld [vmem:[%s10 + $0x10] sm:$0xf]
    %v962 = vld [vmem:[%s10 + $0x14] sm:$0xf]
    %v963 = vld [vmem:[%s10 + $0x18] sm:$0xf]
    %v964 = vld [vmem:[%s10 + $0x1c] sm:$0xf]
    %v965 = vld [vmem:[%s10 + $0x20] sm:$0xf]
    %v966 = vld [vmem:[%s10 + $0x24] sm:$0xf]
    %v967 = vld [vmem:[%s10 + $0x28] sm:$0xf]
    %v968 = vld [vmem:[%s10 + $0x2c] sm:$0xf]
    %v969 = vld [vmem:[%s10 + $0x30] sm:$0xf]
    %v970 = vld [vmem:[%s10 + $0x34] sm:$0xf]
    %v971 = vld [vmem:[%s10 + $0x38] sm:$0xf]
    %v972 = vld [vmem:[%s10 + $0x3c] sm:$0xf]
    %v973 = vld [vmem:[%s11] sm:$0x1]
    %v974 = vld [vmem:[%s12] sm:$0x1]
    %v975 = vld [vmem:[%s13] sm:$0x1]
    %v976 = vld [vmem:[%s14] sm:$0xf]
    %v977 = vld [vmem:[%s14 + $0x4] sm:$0xf]
    %v978 = vld [vmem:[%s14 + $0x8] sm:$0xf]
    %v979 = vld [vmem:[%s14 + $0xc] sm:$0xf]
    %v980 = vld [vmem:[%s14 + $0x10] sm:$0xf]
    %v981 = vld [vmem:[%s14 + $0x14] sm:$0xf]
    %v982 = vld [vmem:[%s14 + $0x18] sm:$0xf]
    %v983 = vld [vmem:[%s14 + $0x1c] sm:$0xf]
    %v984 = vld [vmem:[%s15] sm:$0x1]
    %v985 = vpack.c.bf16 %v955, %v953
    %v987 = vperm.slane %v973, 0
    %v1005 = vunpack.c.l.b16 %v957
    %v1006 = vunpack.c.l.b16 %v958
    %v1007 = vunpack.c.l.b16 %v959
    %v1008 = vunpack.c.l.b16 %v960
    %v1009 = vunpack.c.l.b16 %v961
    %v1010 = vunpack.c.l.b16 %v962
    %v1011 = vunpack.c.l.b16 %v963
    %v1012 = vunpack.c.l.b16 %v964
    %v1013 = vunpack.c.l.b16 %v965
    %v1014 = vunpack.c.l.b16 %v966
    %v1015 = vunpack.c.l.b16 %v967
    %v1016 = vunpack.c.l.b16 %v968
    %v1017 = vunpack.c.l.b16 %v969
    %v1018 = vunpack.c.l.b16 %v970
    %v1019 = vunpack.c.l.b16 %v971
    %v1020 = vunpack.c.l.b16 %v972
    %v1021 = vpack.c.b16 %v1006, %v1005
    %v1022 = vpack.c.b16 %v1008, %v1007
    %v1023 = vpack.c.b16 %v1010, %v1009
    %v1024 = vpack.c.b16 %v1012, %v1011
    %v1025 = vpack.c.b16 %v1014, %v1013
    %v1026 = vpack.c.b16 %v1016, %v1015
    %v1027 = vpack.c.b16 %v1018, %v1017
    %v1028 = vpack.c.b16 %v1020, %v1019
    %1037 = vmatpush.bf16.msra.mxu0 %v1028
    %1038 = vmatpush.bf16.msra.mxu0 %v1027
    %1039 = vmatpush.bf16.msra.mxu0 %v1026
    %1040 = vmatpush.bf16.msra.mxu0 %v1025
    %1041 = vmatpush.bf16.msra.mxu0 %v1024
    %1042 = vmatpush.bf16.msra.mxu0 %v1023
    %1043 = vmatpush.bf16.msra.mxu0 %v1022
    %1044 = vmatpush.bf16.msra.mxu0 %v1021
    %1045 = vmatmul.bf16.gmra.mxu0 %v985
    %v1046 = vpop.f32.mrf.mxu0
    %v1047 = vadd.f32 %v987, %v1046
    %v1048 = vpop.f32.mrf.mxu0
    %v1049 = vadd.f32 %v987, %v1048
    %1050 = vdwg.mxu0
    %v1051 = vsel %vm832, %v1047, 0.0
    %v1052 = vrot.slane %v1051, 4
    %v1053 = vadd.f32 %v1051, %v1052
    %v1054 = vrot.slane %v1053, 2
    %v1055 = vadd.f32 %v1053, %v1054
    %v1056 = vrot.slane %v1055, 1
    %v1057 = vadd.f32 %v1055, %v1056
    %v1058 = vmul.f32 %v1057, %v846
    %v1059 = vsub.f32 %v1047, %v1058
    %v1060 = vmul.f32 %v1059, %v1059
    %v1061 = vsel %vm832, %v1060, 0.0
    %v1062 = vrot.slane %v1061, 4
    %v1063 = vadd.f32 %v1061, %v1062
    %v1064 = vrot.slane %v1063, 2
    %v1065 = vadd.f32 %v1063, %v1064
    %v1066 = vrot.slane %v1065, 1
    %v1067 = vadd.f32 %v1065, %v1066
    %v1068 = vmul.f32 %v1067, %v846
    %v1069 = vadd.f32 %v1068, 1e-05
    %v1070 = vrsqrt.pop %v1069
    %v1071 = vmul.f32 %v1070, %v1069
    %v1072 = vmul.f32 %v1071, %v1070
    %v1073 = vmul.f32 0.5, %v1072
    %v1074 = vsub.f32 1.5, %v1073
    %v1075 = vmul.f32 %v1070, %v1074
    %vm1076 = vweird.f32 %v1069
    %vm1077 = vweird.f32 %v1070
    %vm1078 = vmor %vm1076, %vm1077
    %v1079 = vsel %vm1078, %v1070, %v1075
    %v1080 = vmul.f32 %v1059, %v1079
    %v1081 = vsel %vm832, %v1049, 0.0
    %v1082 = vrot.slane %v1081, 4
    %v1083 = vadd.f32 %v1081, %v1082
    %v1084 = vrot.slane %v1083, 2
    %v1085 = vadd.f32 %v1083, %v1084
    %v1086 = vrot.slane %v1085, 1
    %v1087 = vadd.f32 %v1085, %v1086
    %v1088 = vmul.f32 %v1087, %v846
    %v1089 = vsub.f32 %v1049, %v1088
    %v1090 = vmul.f32 %v1089, %v1089
    %v1091 = vsel %vm832, %v1090, 0.0
    %v1092 = vrot.slane %v1091, 4
    %v1093 = vadd.f32 %v1091, %v1092
    %v1094 = vrot.slane %v1093, 2
    %v1095 = vadd.f32 %v1093, %v1094
    %v1096 = vrot.slane %v1095, 1
    %v1097 = vadd.f32 %v1095, %v1096
    %v1098 = vmul.f32 %v1097, %v846
    %v1099 = vadd.f32 %v1098, 1e-05
    %v1100 = vrsqrt.pop %v1099
    %v1101 = vmul.f32 %v1100, %v1099
    %v1102 = vmul.f32 %v1101, %v1100
    %v1103 = vmul.f32 0.5, %v1102
    %v1104 = vsub.f32 1.5, %v1103
    %v1105 = vmul.f32 %v1100, %v1104
    %vm1106 = vweird.f32 %v1099
    %vm1107 = vweird.f32 %v1100
    %vm1108 = vmor %vm1106, %vm1107
    %v1109 = vsel %vm1108, %v1100, %v1105
    %v1110 = vmul.f32 %v1089, %v1109
    %v1112 = vperm.slane %v974, 0
    %v1114 = vmul.f32 %v1080, %v1112
    %v1115 = vmul.f32 %v1110, %v1112
    %v1117 = vperm.slane %v975, 0
    %v1119 = vadd.f32 %v1114, %v1117
    %v1120 = vadd.f32 %v1115, %v1117
    %v1121 = vmax.f32 %v1119, 0.0
    %v1122 = vmax.f32 %v1120, 0.0
    %v1123 = vpack.c.bf16 %v1122, %v1121
    %v1125 = vperm.slane %v984, 0
    %v1135 = vunpack.c.l.b16 %v976
    %v1136 = vunpack.c.l.b16 %v977
    %v1137 = vunpack.c.l.b16 %v978
    %v1138 = vunpack.c.l.b16 %v979
    %v1139 = vunpack.c.l.b16 %v980
    %v1140 = vunpack.c.l.b16 %v981
    %v1141 = vunpack.c.l.b16 %v982
    %v1142 = vunpack.c.l.b16 %v983
    %v1143 = vpack.c.b16 %v1136, %v1135
    %v1144 = vpack.c.b16 %v1138, %v1137
    %v1145 = vpack.c.b16 %v1140, %v1139
    %v1146 = vpack.c.b16 %v1142, %v1141
    %v1152 = vsel %vm832, %v1123, 0
    %1154 = vmatpush.bf16.msra.mxu0 0
    %1155 = vmatpush.bf16.msra.mxu0 0
    %1156 = vmatpush.bf16.msra.mxu0 0
    %1157 = vmatpush.bf16.msra.mxu0 0
    %1158 = vmatpush.bf16.msra.mxu0 %v1146
    %1159 = vmatpush.bf16.msra.mxu0 %v1145
    %1160 = vmatpush.bf16.msra.mxu0 %v1144
    %1161 = vmatpush.bf16.msra.mxu0 %v1143
    %1162 = vmatmul.bf16.gmra.mxu0 %v1152
    %v1163 = vpop.f32.mrf.mxu0
    %v1164 = vadd.f32 %v1125, %v1163
    %v1165 = vpop.f32.mrf.mxu0
    %v1166 = vadd.f32 %v1125, %v1165
    %1167 = vdwg.mxu0
    %1168 = vst [vmem:[%s24] sm:$0xff] %v1164
    %1169 = vst [vmem:[%s24 + $0x8] sm:$0xff] %v1166
    %s1170 = sld [smem:[#allocation2]]
    %v1171 = vld [vmem:[%s16] sm:$0x3]
    %v1172 = vunpack.c.l.bf16 %v1171
    %v1173 = vstv %s1170
    %v1174 = vmul.f32 %v1173, %v1172
    %s1175 = ssub.f32 1.0, %s1170
    %v1176 = vld [vmem:[%s2] sm:$0x3]
    %v1177 = vunpack.c.l.bf16 %v1176
    %v1178 = vstv %s1175
    %v1179 = vmul.f32 %v1178, %v1177
    %v1180 = vadd.f32 %v1174, %v1179
    %v1181 = vpack.c.bf16 %v1180, %v1180
    %v1182 = vld [vmem:[%s17] sm:$0x1]
    %v1183 = vmul.f32 %v1173, %v1182
    %v1184 = vld [vmem:[%s3] sm:$0x1]
    %v1185 = vmul.f32 %v1178, %v1184
    %v1186 = vadd.f32 %v1183, %v1185
    %v1188 = vperm.slane %v1186, 0
    %v1190 = vpack.c.b16 %v759, %v759
    %v1192 = vsel %vm349, %v1190, 0
    %v1195 = vsel %vm764, %v1181, 0
    %1197 = vmatpush.bf16.msra.mxu0 0
    %1198 = vmatpush.bf16.msra.mxu0 0
    %1199 = vmatpush.bf16.msra.mxu0 0
    %1200 = vmatpush.bf16.msra.mxu0 0
    %1201 = vmatpush.bf16.msra.mxu0 0
    %1202 = vmatpush.bf16.msra.mxu0 0
    %1203 = vmatpush.bf16.msra.mxu0 0
    %1204 = vmatpush.bf16.msra.mxu0 %v1195
    %1205 = vmatmul.bf16.gmra.mxu0 %v1192
    %v1206 = vpop.f32.mrf.mxu0
    %v1207 = vadd.f32 %v1188, %v1206
    %v1208 = vpop.f32.mrf.mxu0
    %1209 = vdwg.mxu0
    %v1210 = vld [vmem:[%s18] sm:$0xf]
    %v1211 = vld [vmem:[%s18 + $0x4] sm:$0xf]
    %v1212 = vld [vmem:[%s18 + $0x8] sm:$0xf]
    %v1213 = vld [vmem:[%s18 + $0xc] sm:$0xf]
    %v1214 = vunpack.c.l.bf16 %v1210
    %v1215 = vunpack.c.l.bf16 %v1211
    %v1216 = vunpack.c.l.bf16 %v1212
    %v1217 = vunpack.c.l.bf16 %v1213
    %v1218 = vmul.f32 %v1173, %v1214
    %v1219 = vmul.f32 %v1173, %v1215
    %v1220 = vmul.f32 %v1173, %v1216
    %v1221 = vmul.f32 %v1173, %v1217
    %v1222 = vld [vmem:[%s4] sm:$0xf]
    %v1223 = vld [vmem:[%s4 + $0x4] sm:$0xf]
    %v1224 = vld [vmem:[%s4 + $0x8] sm:$0xf]
    %v1225 = vld [vmem:[%s4 + $0xc] sm:$0xf]
    %v1226 = vunpack.c.l.bf16 %v1222
    %v1227 = vunpack.c.l.bf16 %v1223
    %v1228 = vunpack.c.l.bf16 %v1224
    %v1229 = vunpack.c.l.bf16 %v1225
    %v1230 = vmul.f32 %v1178, %v1226
    %v1231 = vmul.f32 %v1178, %v1227
    %v1232 = vmul.f32 %v1178, %v1228
    %v1233 = vmul.f32 %v1178, %v1229
    %v1234 = vadd.f32 %v1218, %v1230
    %v1235 = vadd.f32 %v1219, %v1231
    %v1236 = vadd.f32 %v1220, %v1232
    %v1237 = vadd.f32 %v1221, %v1233
    %v1238 = vpack.c.bf16 %v1235, %v1234
    %v1239 = vpack.c.bf16 %v1237, %v1236
    %v1240 = vld [vmem:[%s19] sm:$0x1]
    %v1241 = vmul.f32 %v1173, %v1240
    %v1242 = vld [vmem:[%s5] sm:$0x1]
    %v1243 = vmul.f32 %v1178, %v1242
    %v1244 = vadd.f32 %v1241, %v1243
    %v1245 = vld [vmem:[%s20] sm:$0x1]
    %v1246 = vmul.f32 %v1173, %v1245
    %v1247 = vld [vmem:[%s6] sm:$0x1]
    %v1248 = vmul.f32 %v1178, %v1247
    %v1249 = vadd.f32 %v1246, %v1248
    %v1250 = vld [vmem:[%s21] sm:$0x1]
    %v1251 = vmul.f32 %v1173, %v1250
    %v1252 = vld [vmem:[%s7] sm:$0x1]
    %v1253 = vmul.f32 %v1178, %v1252
    %v1254 = vadd.f32 %v1251, %v1253
    %v1255 = vld [vmem:[%s22] sm:$0xf]
    %v1256 = vld [vmem:[%s22 + $0x4] sm:$0xf]
    %v1257 = vld [vmem:[%s22 + $0x8] sm:$0xf]
    %v1258 = vld [vmem:[%s22 + $0xc] sm:$0xf]
    %v1259 = vld [vmem:[%s22 + $0x10] sm:$0xf]
    %v1260 = vld [vmem:[%s22 + $0x14] sm:$0xf]
    %v1261 = vld [vmem:[%s22 + $0x18] sm:$0xf]
    %v1262 = vld [vmem:[%s22 + $0x1c] sm:$0xf]
    %v1263 = vunpack.c.l.bf16 %v1255
    %v1264 = vunpack.c.l.bf16 %v1256
    %v1265 = vunpack.c.l.bf16 %v1257
    %v1266 = vunpack.c.l.bf16 %v1258
    %v1267 = vunpack.c.l.bf16 %v1259
    %v1268 = vunpack.c.l.bf16 %v1260
    %v1269 = vunpack.c.l.bf16 %v1261
    %v1270 = vunpack.c.l.bf16 %v1262
    %v1271 = vmul.f32 %v1173, %v1263
    %v1272 = vmul.f32 %v1173, %v1264
    %v1273 = vmul.f32 %v1173, %v1265
    %v1274 = vmul.f32 %v1173, %v1266
    %v1275 = vmul.f32 %v1173, %v1267
    %v1276 = vmul.f32 %v1173, %v1268
    %v1277 = vmul.f32 %v1173, %v1269
    %v1278 = vmul.f32 %v1173, %v1270
    %v1279 = vld [vmem:[%s8] sm:$0xf]
    %v1280 = vld [vmem:[%s8 + $0x4] sm:$0xf]
    %v1281 = vld [vmem:[%s8 + $0x8] sm:$0xf]
    %v1282 = vld [vmem:[%s8 + $0xc] sm:$0xf]
    %v1283 = vld [vmem:[%s8 + $0x10] sm:$0xf]
    %v1284 = vld [vmem:[%s8 + $0x14] sm:$0xf]
    %v1285 = vld [vmem:[%s8 + $0x18] sm:$0xf]
    %v1286 = vld [vmem:[%s8 + $0x1c] sm:$0xf]
    %v1287 = vunpack.c.l.bf16 %v1279
    %v1288 = vunpack.c.l.bf16 %v1280
    %v1289 = vunpack.c.l.bf16 %v1281
    %v1290 = vunpack.c.l.bf16 %v1282
    %v1291 = vunpack.c.l.bf16 %v1283
    %v1292 = vunpack.c.l.bf16 %v1284
    %v1293 = vunpack.c.l.bf16 %v1285
    %v1294 = vunpack.c.l.bf16 %v1286
    %v1295 = vmul.f32 %v1178, %v1287
    %v1296 = vmul.f32 %v1178, %v1288
    %v1297 = vmul.f32 %v1178, %v1289
    %v1298 = vmul.f32 %v1178, %v1290
    %v1299 = vmul.f32 %v1178, %v1291
    %v1300 = vmul.f32 %v1178, %v1292
    %v1301 = vmul.f32 %v1178, %v1293
    %v1302 = vmul.f32 %v1178, %v1294
    %v1303 = vadd.f32 %v1271, %v1295
    %v1304 = vadd.f32 %v1272, %v1296
    %v1305 = vadd.f32 %v1273, %v1297
    %v1306 = vadd.f32 %v1274, %v1298
    %v1307 = vadd.f32 %v1275, %v1299
    %v1308 = vadd.f32 %v1276, %v1300
    %v1309 = vadd.f32 %v1277, %v1301
    %v1310 = vadd.f32 %v1278, %v1302
    %v1311 = vpack.c.bf16 %v1304, %v1303
    %v1312 = vpack.c.bf16 %v1306, %v1305
    %v1313 = vpack.c.bf16 %v1308, %v1307
    %v1314 = vpack.c.bf16 %v1310, %v1309
    %v1315 = vld [vmem:[%s23] sm:$0x1]
    %v1316 = vmul.f32 %v1173, %v1315
    %v1317 = vld [vmem:[%s9] sm:$0x1]
    %v1318 = vmul.f32 %v1178, %v1317
    %v1319 = vadd.f32 %v1316, %v1318
    %v1320 = vpack.c.bf16 %v1207, %v1207
    %v1322 = vperm.slane %v1244, 0
    %v1325 = vsel %vm814, %v1320, 0
    %1327 = vmatpush.bf16.msra.mxu0 0
    %1328 = vmatpush.bf16.msra.mxu0 0
    %1329 = vmatpush.bf16.msra.mxu0 0
    %1330 = vmatpush.bf16.msra.mxu0 0
    %1331 = vmatpush.bf16.msra.mxu0 0
    %1332 = vmatpush.bf16.msra.mxu0 0
    %1333 = vmatpush.bf16.msra.mxu0 %v1239
    %1334 = vmatpush.bf16.msra.mxu0 %v1238
    %1335 = vmatmul.bf16.gmra.mxu0 %v1325
    %v1336 = vpop.f32.mrf.mxu0
    %v1337 = vadd.f32 %v1322, %v1336
    %v1338 = vpop.f32.mrf.mxu0
    %1339 = vdwg.mxu0
    %v1340 = vsel %vm832, %v1337, 0.0
    %v1341 = vrot.slane %v1340, 4
    %v1342 = vadd.f32 %v1340, %v1341
    %v1343 = vrot.slane %v1342, 2
    %v1344 = vadd.f32 %v1342, %v1343
    %v1345 = vrot.slane %v1344, 1
    %v1346 = vadd.f32 %v1344, %v1345
    %v1347 = vmul.f32 %v1346, %v846
    %v1348 = vsub.f32 %v1337, %v1347
    %v1349 = vmul.f32 %v1348, %v1348
    %v1350 = vsel %vm832, %v1349, 0.0
    %v1351 = vrot.slane %v1350, 4
    %v1352 = vadd.f32 %v1350, %v1351
    %v1353 = vrot.slane %v1352, 2
    %v1354 = vadd.f32 %v1352, %v1353
    %v1355 = vrot.slane %v1354, 1
    %v1356 = vadd.f32 %v1354, %v1355
    %v1357 = vmul.f32 %v1356, %v846
    %v1358 = vadd.f32 %v1357, 1e-05
    %v1359 = vrsqrt.pop %v1358
    %v1360 = vmul.f32 %v1359, %v1358
    %v1361 = vmul.f32 %v1360, %v1359
    %v1362 = vmul.f32 0.5, %v1361
    %v1363 = vsub.f32 1.5, %v1362
    %v1364 = vmul.f32 %v1359, %v1363
    %vm1365 = vweird.f32 %v1358
    %vm1366 = vweird.f32 %v1359
    %vm1367 = vmor %vm1365, %vm1366
    %v1368 = vsel %vm1367, %v1359, %v1364
    %v1369 = vmul.f32 %v1348, %v1368
    %v1371 = vperm.slane %v1249, 0
    %v1373 = vmul.f32 %v1369, %v1371
    %v1375 = vperm.slane %v1254, 0
    %v1377 = vadd.f32 %v1373, %v1375
    %v1378 = vmax.f32 %v1377, 0.0
    %v1379 = vpack.c.bf16 %v1378, %v1378
    %v1381 = vperm.slane %v1319, 0
    %v1384 = vsel %vm832, %v1379, 0
    %1386 = vmatpush.bf16.msra.mxu0 0
    %1387 = vmatpush.bf16.msra.mxu0 0
    %1388 = vmatpush.bf16.msra.mxu0 0
    %1389 = vmatpush.bf16.msra.mxu0 0
    %1390 = vmatpush.bf16.msra.mxu0 %v1314
    %1391 = vmatpush.bf16.msra.mxu0 %v1313
    %1392 = vmatpush.bf16.msra.mxu0 %v1312
    %1393 = vmatpush.bf16.msra.mxu0 %v1311
    %1394 = vmatmul.bf16.gmra.mxu0 %v1384
    %v1395 = vpop.f32.mrf.mxu0
    %v1396 = vadd.f32 %v1381, %v1395
    %v1397 = vpop.f32.mrf.mxu0
    %1398 = vdwg.mxu0
    %1399 = vst [vmem:[%s25] sm:$0xff] %v1396
    %s1400 = sld [smem:[#allocation2 + $0x1]]
    %v1401 = vld [vmem:[%s16] sm:$0x3]
    %v1402 = vunpack.c.l.bf16 %v1401
    %v1403 = vstv %s1400
    %v1404 = vmul.f32 %v1403, %v1402
    %s1405 = ssub.f32 1.0, %s1400
    %v1406 = vld [vmem:[%s2] sm:$0x3]
    %v1407 = vunpack.c.l.bf16 %v1406
    %v1408 = vstv %s1405
    %v1409 = vmul.f32 %v1408, %v1407
    %v1410 = vadd.f32 %v1404, %v1409
    %v1411 = vpack.c.bf16 %v1410, %v1410
    %v1412 = vld [vmem:[%s17] sm:$0x1]
    %v1413 = vmul.f32 %v1403, %v1412
    %v1414 = vld [vmem:[%s3] sm:$0x1]
    %v1415 = vmul.f32 %v1408, %v1414
    %v1416 = vadd.f32 %v1413, %v1415
    %v1418 = vperm.slane %v1416, 0
    %v1420 = vpack.c.b16 %v752, %v752
    %v1422 = vsel %vm349, %v1420, 0
    %v1425 = vsel %vm764, %v1411, 0
    %1427 = vmatpush.bf16.msra.mxu0 0
    %1428 = vmatpush.bf16.msra.mxu0 0
    %1429 = vmatpush.bf16.msra.mxu0 0
    %1430 = vmatpush.bf16.msra.mxu0 0
    %1431 = vmatpush.bf16.msra.mxu0 0
    %1432 = vmatpush.bf16.msra.mxu0 0
    %1433 = vmatpush.bf16.msra.mxu0 0
    %1434 = vmatpush.bf16.msra.mxu0 %v1425
    %1435 = vmatmul.bf16.gmra.mxu0 %v1422
    %v1436 = vpop.f32.mrf.mxu0
    %v1437 = vadd.f32 %v1418, %v1436
    %v1438 = vpop.f32.mrf.mxu0
    %1439 = vdwg.mxu0
    %v1440 = vld [vmem:[%s18] sm:$0xf]
    %v1441 = vld [vmem:[%s18 + $0x4] sm:$0xf]
    %v1442 = vld [vmem:[%s18 + $0x8] sm:$0xf]
    %v1443 = vld [vmem:[%s18 + $0xc] sm:$0xf]
    %v1444 = vunpack.c.l.bf16 %v1440
    %v1445 = vunpack.c.l.bf16 %v1441
    %v1446 = vunpack.c.l.bf16 %v1442
    %v1447 = vunpack.c.l.bf16 %v1443
    %v1448 = vmul.f32 %v1403, %v1444
    %v1449 = vmul.f32 %v1403, %v1445
    %v1450 = vmul.f32 %v1403, %v1446
    %v1451 = vmul.f32 %v1403, %v1447
    %v1452 = vld [vmem:[%s4] sm:$0xf]
    %v1453 = vld [vmem:[%s4 + $0x4] sm:$0xf]
    %v1454 = vld [vmem:[%s4 + $0x8] sm:$0xf]
    %v1455 = vld [vmem:[%s4 + $0xc] sm:$0xf]
    %v1456 = vunpack.c.l.bf16 %v1452
    %v1457 = vunpack.c.l.bf16 %v1453
    %v1458 = vunpack.c.l.bf16 %v1454
    %v1459 = vunpack.c.l.bf16 %v1455
    %v1460 = vmul.f32 %v1408, %v1456
    %v1461 = vmul.f32 %v1408, %v1457
    %v1462 = vmul.f32 %v1408, %v1458
    %v1463 = vmul.f32 %v1408, %v1459
    %v1464 = vadd.f32 %v1448, %v1460
    %v1465 = vadd.f32 %v1449, %v1461
    %v1466 = vadd.f32 %v1450, %v1462
    %v1467 = vadd.f32 %v1451, %v1463
    %v1468 = vpack.c.bf16 %v1465, %v1464
    %v1469 = vpack.c.bf16 %v1467, %v1466
    %v1470 = vld [vmem:[%s19] sm:$0x1]
    %v1471 = vmul.f32 %v1403, %v1470
    %v1472 = vld [vmem:[%s5] sm:$0x1]
    %v1473 = vmul.f32 %v1408, %v1472
    %v1474 = vadd.f32 %v1471, %v1473
    %v1475 = vld [vmem:[%s20] sm:$0x1]
    %v1476 = vmul.f32 %v1403, %v1475
    %v1477 = vld [vmem:[%s6] sm:$0x1]
    %v1478 = vmul.f32 %v1408, %v1477
    %v1479 = vadd.f32 %v1476, %v1478
    %v1480 = vld [vmem:[%s21] sm:$0x1]
    %v1481 = vmul.f32 %v1403, %v1480
    %v1482 = vld [vmem:[%s7] sm:$0x1]
    %v1483 = vmul.f32 %v1408, %v1482
    %v1484 = vadd.f32 %v1481, %v1483
    %v1485 = vld [vmem:[%s22] sm:$0xf]
    %v1486 = vld [vmem:[%s22 + $0x4] sm:$0xf]
    %v1487 = vld [vmem:[%s22 + $0x8] sm:$0xf]
    %v1488 = vld [vmem:[%s22 + $0xc] sm:$0xf]
    %v1489 = vld [vmem:[%s22 + $0x10] sm:$0xf]
    %v1490 = vld [vmem:[%s22 + $0x14] sm:$0xf]
    %v1491 = vld [vmem:[%s22 + $0x18] sm:$0xf]
    %v1492 = vld [vmem:[%s22 + $0x1c] sm:$0xf]
    %v1493 = vunpack.c.l.bf16 %v1485
    %v1494 = vunpack.c.l.bf16 %v1486
    %v1495 = vunpack.c.l.bf16 %v1487
    %v1496 = vunpack.c.l.bf16 %v1488
    %v1497 = vunpack.c.l.bf16 %v1489
    %v1498 = vunpack.c.l.bf16 %v1490
    %v1499 = vunpack.c.l.bf16 %v1491
    %v1500 = vunpack.c.l.bf16 %v1492
    %v1501 = vmul.f32 %v1403, %v1493
    %v1502 = vmul.f32 %v1403, %v1494
    %v1503 = vmul.f32 %v1403, %v1495
    %v1504 = vmul.f32 %v1403, %v1496
    %v1505 = vmul.f32 %v1403, %v1497
    %v1506 = vmul.f32 %v1403, %v1498
    %v1507 = vmul.f32 %v1403, %v1499
    %v1508 = vmul.f32 %v1403, %v1500
    %v1509 = vld [vmem:[%s8] sm:$0xf]
    %v1510 = vld [vmem:[%s8 + $0x4] sm:$0xf]
    %v1511 = vld [vmem:[%s8 + $0x8] sm:$0xf]
    %v1512 = vld [vmem:[%s8 + $0xc] sm:$0xf]
    %v1513 = vld [vmem:[%s8 + $0x10] sm:$0xf]
    %v1514 = vld [vmem:[%s8 + $0x14] sm:$0xf]
    %v1515 = vld [vmem:[%s8 + $0x18] sm:$0xf]
    %v1516 = vld [vmem:[%s8 + $0x1c] sm:$0xf]
    %v1517 = vunpack.c.l.bf16 %v1509
    %v1518 = vunpack.c.l.bf16 %v1510
    %v1519 = vunpack.c.l.bf16 %v1511
    %v1520 = vunpack.c.l.bf16 %v1512
    %v1521 = vunpack.c.l.bf16 %v1513
    %v1522 = vunpack.c.l.bf16 %v1514
    %v1523 = vunpack.c.l.bf16 %v1515
    %v1524 = vunpack.c.l.bf16 %v1516
    %v1525 = vmul.f32 %v1408, %v1517
    %v1526 = vmul.f32 %v1408, %v1518
    %v1527 = vmul.f32 %v1408, %v1519
    %v1528 = vmul.f32 %v1408, %v1520
    %v1529 = vmul.f32 %v1408, %v1521
    %v1530 = vmul.f32 %v1408, %v1522
    %v1531 = vmul.f32 %v1408, %v1523
    %v1532 = vmul.f32 %v1408, %v1524
    %v1533 = vadd.f32 %v1501, %v1525
    %v1534 = vadd.f32 %v1502, %v1526
    %v1535 = vadd.f32 %v1503, %v1527
    %v1536 = vadd.f32 %v1504, %v1528
    %v1537 = vadd.f32 %v1505, %v1529
    %v1538 = vadd.f32 %v1506, %v1530
    %v1539 = vadd.f32 %v1507, %v1531
    %v1540 = vadd.f32 %v1508, %v1532
    %v1541 = vpack.c.bf16 %v1534, %v1533
    %v1542 = vpack.c.bf16 %v1536, %v1535
    %v1543 = vpack.c.bf16 %v1538, %v1537
    %v1544 = vpack.c.bf16 %v1540, %v1539
    %v1545 = vld [vmem:[%s23] sm:$0x1]
    %v1546 = vmul.f32 %v1403, %v1545
    %v1547 = vld [vmem:[%s9] sm:$0x1]
    %v1548 = vmul.f32 %v1408, %v1547
    %v1549 = vadd.f32 %v1546, %v1548
    %v1550 = vpack.c.bf16 %v1437, %v1437
    %v1552 = vperm.slane %v1474, 0
    %v1555 = vsel %vm814, %v1550, 0
    %1557 = vmatpush.bf16.msra.mxu0 0
    %1558 = vmatpush.bf16.msra.mxu0 0
    %1559 = vmatpush.bf16.msra.mxu0 0
    %1560 = vmatpush.bf16.msra.mxu0 0
    %1561 = vmatpush.bf16.msra.mxu0 0
    %1562 = vmatpush.bf16.msra.mxu0 0
    %1563 = vmatpush.bf16.msra.mxu0 %v1469
    %1564 = vmatpush.bf16.msra.mxu0 %v1468
    %1565 = vmatmul.bf16.gmra.mxu0 %v1555
    %v1566 = vpop.f32.mrf.mxu0
    %v1567 = vadd.f32 %v1552, %v1566
    %v1568 = vpop.f32.mrf.mxu0
    %1569 = vdwg.mxu0
    %v1570 = vsel %vm832, %v1567, 0.0
    %v1571 = vrot.slane %v1570, 4
    %v1572 = vadd.f32 %v1570, %v1571
    %v1573 = vrot.slane %v1572, 2
    %v1574 = vadd.f32 %v1572, %v1573
    %v1575 = vrot.slane %v1574, 1
    %v1576 = vadd.f32 %v1574, %v1575
    %v1577 = vmul.f32 %v1576, %v846
    %v1578 = vsub.f32 %v1567, %v1577
    %v1579 = vmul.f32 %v1578, %v1578
    %v1580 = vsel %vm832, %v1579, 0.0
    %v1581 = vrot.slane %v1580, 4
    %v1582 = vadd.f32 %v1580, %v1581
    %v1583 = vrot.slane %v1582, 2
    %v1584 = vadd.f32 %v1582, %v1583
    %v1585 = vrot.slane %v1584, 1
    %v1586 = vadd.f32 %v1584, %v1585
    %v1587 = vmul.f32 %v1586, %v846
    %v1588 = vadd.f32 %v1587, 1e-05
    %v1589 = vrsqrt.pop %v1588
    %v1590 = vmul.f32 %v1589, %v1588
    %v1591 = vmul.f32 %v1590, %v1589
    %v1592 = vmul.f32 0.5, %v1591
    %v1593 = vsub.f32 1.5, %v1592
    %v1594 = vmul.f32 %v1589, %v1593
    %vm1595 = vweird.f32 %v1588
    %vm1596 = vweird.f32 %v1589
    %vm1597 = vmor %vm1595, %vm1596
    %v1598 = vsel %vm1597, %v1589, %v1594
    %v1599 = vmul.f32 %v1578, %v1598
    %v1601 = vperm.slane %v1479, 0
    %v1603 = vmul.f32 %v1599, %v1601
    %v1605 = vperm.slane %v1484, 0
    %v1607 = vadd.f32 %v1603, %v1605
    %v1608 = vmax.f32 %v1607, 0.0
    %v1609 = vpack.c.bf16 %v1608, %v1608
    %v1611 = vperm.slane %v1549, 0
    %v1614 = vsel %vm832, %v1609, 0
    %1616 = vmatpush.bf16.msra.mxu0 0
    %1617 = vmatpush.bf16.msra.mxu0 0
    %1618 = vmatpush.bf16.msra.mxu0 0
    %1619 = vmatpush.bf16.msra.mxu0 0
    %1620 = vmatpush.bf16.msra.mxu0 %v1544
    %1621 = vmatpush.bf16.msra.mxu0 %v1543
    %1622 = vmatpush.bf16.msra.mxu0 %v1542
    %1623 = vmatpush.bf16.msra.mxu0 %v1541
    %1624 = vmatmul.bf16.gmra.mxu0 %v1614
    %v1625 = vpop.f32.mrf.mxu0
    %v1626 = vadd.f32 %v1611, %v1625
    %v1627 = vpop.f32.mrf.mxu0
    %1628 = vdwg.mxu0
    %1629 = vst [vmem:[%s25 + $0x8] sm:$0xff] %v1626
    // Predicated region
    $region102: #{_byol_forward_impl.1} parent=1 // pred_check
      _
    $region103: #{_byol_forward_impl.1} parent=1 // pred_check_branch
      %1631 = sbr.rel (0) target = $region105
    $region104: #{_byol_forward_impl.1} parent=1 // pred_region
      _
    $region105: #{_byol_forward_impl.1} parent=1 // pred_fallthru
      _
    // Predicated region
    $region106: #{_byol_forward_impl.1} parent=1 // pred_check
      _
    $region107: #{_byol_forward_impl.1} parent=1 // pred_check_branch
      %1633 = sbr.rel (0) target = $region109
    $region108: #{_byol_forward_impl.1} parent=1 // pred_region
      _
    $region109: #{_byol_forward_impl.1} parent=1 // pred_fallthru
      _
    // Predicated region
    $region110: #{_byol_forward_impl.1} parent=1 // pred_check
      _
    $region111: #{_byol_forward_impl.1} parent=1 // pred_check_branch
      %1635 = sbr.rel (0) target = $region113
    $region112: #{_byol_forward_impl.1} parent=1 // pred_region
      _
    $region113: #{_byol_forward_impl.1} parent=1 // pred_fallthru
      _
    // Predicated region
    $region114: #{_byol_forward_impl.1} parent=1 // pred_check
      _
    $region115: #{_byol_forward_impl.1} parent=1 // pred_check_branch
      %1637 = sbr.rel (0) target = $region117
    $region116: #{_byol_forward_impl.1} parent=1 // pred_region
      _
    $region117: #{_byol_forward_impl.1} parent=1 // pred_fallthru
      _
    %1638 = vsyncpa [#allocation3], 1

</llo_original>
